<compile_context>
chip_gen: v7x
topology: tpu7x:2x2x1
jax: 0.10.0
libtpu: 0.0.40
codegen_flags: <defaults>
</compile_context>

<pallas_src>
import functools

import jax
import jax.numpy as jnp
from jax.experimental import pallas as pl
from jax.experimental.pallas import tpu as pltpu

_HP = jax.lax.Precision.HIGHEST  # wrapper-side (XLA) prep matmuls at full f32


# ----------------------------------------------------------------------------
# Small helpers
# ----------------------------------------------------------------------------
def _cdiv(a, b):
    return -(-a // b)


def _round_up(x, m):
    return _cdiv(x, m) * m


def _pad_axis(x, axis, target):
    pad = target - x.shape[axis]
    if pad == 0:
        return x
    widths = [(0, 0)] * x.ndim
    widths[axis] = (0, pad)
    return jnp.pad(x, widths)


def _vmem_capacity_bytes():
    try:
        return int(pltpu.get_tpu_info().vmem_capacity_bytes)
    except Exception:
        return 64 << 20  # v7x per-TensorCore VMEM (smallest of current gens)


def _tile_vmem_bytes(bt, mp, ap, sp):
    # double-buffered f32 I/O tiles (y in, x_hat out) + f32 working set
    # (z, u, fxu, base, x_hat) for one batch tile.
    return 2 * bt * (mp + ap) * 4 + bt * (3 * sp + 2 * ap) * 4


# ----------------------------------------------------------------------------
# ADMM iteration chain (shared by the Pallas kernels and the matched-precision
# pure-JAX emulation).  All matmuls: operands in `a_s.dtype`, accumulate f32.
#
# Shrinkage:   z = sign(x)*max(|x|-thr, 0) == x - clip(x, -thr, thr)
# Dual update: u += fxu - z              ==  u + clip(fxu, -thr, thr)
# ----------------------------------------------------------------------------
def _gram_iterations(y, a_s, a_k, phi_s, gram, *, thr, iterations, unroll):
    """Gram form: one dependent (Bt,S)x(S,S) matmul per iteration."""
    f32 = jnp.float32
    cdt = a_s.dtype
    yc = y.astype(cdt)
    base = jnp.dot(yc, a_s, preferred_element_type=f32)        # (Bt, Ap)
    if iterations <= 1:
        return base                                            # z = u = 0
    k0 = jnp.dot(yc, a_k, preferred_element_type=f32)          # (Bt, Sp) == base @ phi.T
    c = jnp.clip(k0, -thr, thr)                                # peeled iteration 0
    z, u = k0 - c, c

    def body(zu):
        z, u = zu
        w = (z - u).astype(cdt)
        fxu = k0 + jnp.dot(w, gram, preferred_element_type=f32) + u
        c = jnp.clip(fxu, -thr, thr)
        return fxu - c, u + c

    n_mid = iterations - 2
    if n_mid > 0:
        if unroll:
            for _ in range(n_mid):
                z, u = body((z, u))
        else:
            z, u = jax.lax.fori_loop(0, n_mid, lambda _, zu: body(zu), (z, u),
                                     unroll=2)
    # Peeled last iteration: only x_hat is observable (its fxu/z/u are dead).
    return base + jnp.dot((z - u).astype(cdt), phi_s, preferred_element_type=f32)


def _direct_iterations(y, a_s, phi_t, phi_s, *, thr, iterations, unroll):
    """Direct form: two dependent matmuls per iteration (redundancy > 2)."""
    f32 = jnp.float32
    cdt = a_s.dtype
    yc = y.astype(cdt)
    base = jnp.dot(yc, a_s, preferred_element_type=f32)        # (Bt, Ap)
    if iterations <= 1:
        return base
    fxu = jnp.dot(base.astype(cdt), phi_t, preferred_element_type=f32)  # iter 0
    c = jnp.clip(fxu, -thr, thr)
    z, u = fxu - c, c

    def body(zu):
        z, u = zu
        x_hat = base + jnp.dot((z - u).astype(cdt), phi_s,
                               preferred_element_type=f32)
        fxu = jnp.dot(x_hat.astype(cdt), phi_t, preferred_element_type=f32) + u
        c = jnp.clip(fxu, -thr, thr)
        return fxu - c, u + c

    n_mid = iterations - 2
    if n_mid > 0:
        if unroll:
            for _ in range(n_mid):
                z, u = body((z, u))
        else:
            z, u = jax.lax.fori_loop(0, n_mid, lambda _, zu: body(zu), (z, u),
                                     unroll=2)
    return base + jnp.dot((z - u).astype(cdt), phi_s, preferred_element_type=f32)


# ----------------------------------------------------------------------------
# Pallas kernels: full ADMM decode for one batch tile, everything in VMEM.
# ----------------------------------------------------------------------------
def _dad_gram_kernel(minmax_ref, y_ref, a_s_ref, a_k_ref, phi_s_ref, gram_ref,
                     o_ref, *, thr, iterations, unroll):
    x_hat = _gram_iterations(y_ref[...], a_s_ref[...], a_k_ref[...],
                             phi_s_ref[...], gram_ref[...],
                             thr=thr, iterations=iterations, unroll=unroll)
    o_ref[...] = jnp.clip(x_hat, minmax_ref[0], minmax_ref[1]).astype(o_ref.dtype)


def _dad_kernel(minmax_ref, y_ref, a_s_ref, phi_t_ref, phi_s_ref,
                o_ref, *, thr, iterations, unroll):
    x_hat = _direct_iterations(y_ref[...], a_s_ref[...], phi_t_ref[...],
                               phi_s_ref[...],
                               thr=thr, iterations=iterations, unroll=unroll)
    o_ref[...] = jnp.clip(x_hat, minmax_ref[0], minmax_ref[1]).astype(o_ref.dtype)


# ----------------------------------------------------------------------------
# Operand preparation (hoisted out of the grid / ADMM loop).
# ----------------------------------------------------------------------------
def _prepare_operands(a, phi, *, rho, matmul_dtype, vmem_budget):
    f32 = jnp.float32
    a = a.astype(f32)
    phi = phi.astype(f32)
    M, A = a.shape
    S = phi.shape[0]

    # multiplier(): the reference only uses the DIAGONALS of inv(L)/inv(U).
    # L from LU is unit-lower => diag(inv(L)) == 1 and diag(inv(U)) == 1/diag(U),
    # so no triangular inverses are needed.
    # TODO(synk): the LU factorization itself has no clean Pallas equivalent; done once in XLA.
    m = jnp.dot(a.T, a, precision=_HP) + rho * jnp.dot(phi.T, phi, precision=_HP)
    _, _, u_fac = jax.scipy.linalg.lu(m)
    dscale = 1.0 / jnp.diag(u_fac)                    # (A,)

    # Fold the diagonal scaling (and rho) into the static operands:
    a_s = a * dscale[None, :]                         # (M, A): y @ a_s == dscale*(y @ a)
    phi_t = phi.T                                     # (A, S)
    phi_s = (rho * phi) * dscale[None, :]             # (S, A)

    # Lane-dense padding (multiples of 128): zero padding leaves results unchanged.
    Mp, Ap, Sp = (_round_up(d, 128) for d in (M, A, S))
    itemsize = jax.dtypes.canonicalize_dtype(matmul_dtype).itemsize

    # Gram form (one dependent matmul / iter) only when it does not raise FLOPs
    # (S <= 2A) and the S^2 Gram matrix fits the VMEM budget (v7x 64 MiB gate).
    w_common = (Mp * Ap + Sp * Ap) * itemsize                   # a_s + phi_s
    w_gram = w_common + (Mp * Sp + Sp * Sp) * itemsize          # + a_k + gram
    use_gram = (S <= 2 * A) and (
        2 * w_gram + _tile_vmem_bytes(8, Mp, Ap, Sp) <= vmem_budget)

    pad2 = lambda w, r, c: _pad_axis(_pad_axis(w, 0, r), 1, c)
    cast = lambda w: w.astype(matmul_dtype)

    ops = dict(M=M, A=A, S=S, Mp=Mp, Ap=Ap, Sp=Sp, use_gram=use_gram)
    ops["a_s"] = cast(pad2(a_s, Mp, Ap))
    ops["phi_s"] = cast(pad2(phi_s, Sp, Ap))
    if use_gram:
        a_k = jnp.dot(a_s, phi_t, precision=_HP)      # (M, S): y @ a_k == base @ phi.T
        gram = jnp.dot(phi_s, phi_t, precision=_HP)   # (S, S)
        ops["a_k"] = cast(pad2(a_k, Mp, Sp))
        ops["gram"] = cast(pad2(gram, Sp, Sp))
        ops["weight_bytes"] = w_gram
    else:
        ops["phi_t"] = cast(pad2(phi_t, Ap, Sp))
        ops["weight_bytes"] = w_common + Ap * Sp * itemsize
    return ops


# ----------------------------------------------------------------------------
# Forward wrapper: clamp scalars, LU-derived scaling, batch tiling, pallas_call.
# ----------------------------------------------------------------------------
def dad_forward(y, x, a, phi, *, lamda=1e-4, rho=1.0, admm_iterations=5,
                matmul_dtype=jnp.bfloat16, unroll_threshold=8):
    f32 = jnp.float32
    B = x.shape[0]
    x2 = jnp.reshape(x, (B, -1)).astype(f32)          # (B, A)  clamp bounds only
    y2 = jnp.reshape(y, (B, -1)).astype(f32)          # (B, M)
    A = a.shape[1]

    # Global clamp bounds (scalars) -> SMEM.
    minmax = jnp.stack([jnp.min(x2), jnp.max(x2)]).astype(f32)   # (2,)

    # VMEM budget: ~75% of the physical per-core VMEM (48 MiB v7x, 96 MiB v5e/v6e).
    vmem_budget = min(int(_vmem_capacity_bytes() * 3 // 4), 100 << 20)

    ops = _prepare_operands(a, phi, rho=rho, matmul_dtype=matmul_dtype,
                            vmem_budget=vmem_budget)
    Mp, Ap, Sp = ops["Mp"], ops["Ap"], ops["Sp"]

    thr = float(lamda) / float(rho)
    iterations = int(admm_iterations)
    unroll = iterations <= unroll_threshold

    # Batch tiling: up to 256 rows per step (256-wide v6e/v7x MXU); shrink until
    # the worst-case (double-buffered) working set fits VMEM; split B across
    # >= 2 grid steps when possible so both v7x TensorCores get work; split
    # evenly so tail padding stays < 8 rows per tile.
    b_cap = 256
    while b_cap > 8 and (2 * ops["weight_bytes"]
                         + _tile_vmem_bytes(b_cap, Mp, Ap, Sp)) > vmem_budget:
        b_cap //= 2
    n_tiles = _cdiv(B, b_cap)
    if B >= 16:
        n_tiles = max(n_tiles, 2)
    b_tile = _round_up(_cdiv(B, n_tiles), 8)
    b_pad = b_tile * n_tiles
    grid = (n_tiles,)

    y_pad = _pad_axis(_pad_axis(y2, 1, Mp), 0, b_pad)

    vmem_limit = int(min(vmem_budget,
                         max(2 * ops["weight_bytes"]
                             + 2 * _tile_vmem_bytes(b_tile, Mp, Ap, Sp)
                             + (4 << 20),
                             32 << 20)))

    rep = lambda i: (0, 0)
    smem_spec = pl.BlockSpec(memory_space=pltpu.MemorySpace.SMEM)

    if ops["use_gram"]:
        kernel = functools.partial(_dad_gram_kernel, thr=thr,
                                   iterations=iterations, unroll=unroll)
        weights = (("a_s", (Mp, Ap)), ("a_k", (Mp, Sp)),
                   ("phi_s", (Sp, Ap)), ("gram", (Sp, Sp)))
    else:
        kernel = functools.partial(_dad_kernel, thr=thr,
                                   iterations=iterations, unroll=unroll)
        weights = (("a_s", (Mp, Ap)), ("phi_t", (Ap, Sp)), ("phi_s", (Sp, Ap)))

    args = (minmax, y_pad) + tuple(ops[name] for name, _ in weights)

    def _invariant_spec(shape, single_buffer):
        # Grid-invariant operand: single-buffer it (default pipelining would
        # double-buffer the identical block every step, doubling weight VMEM).
        if single_buffer:
            return pl.BlockSpec(shape, rep, pipeline_mode=pl.Buffered(1))
        return pl.BlockSpec(shape, rep)

    out = None
    for single_buffer in (True, False):
        try:
            in_specs = [smem_spec,
                        pl.BlockSpec((b_tile, Mp), lambda i: (i, 0))]
            in_specs += [_invariant_spec(shape, single_buffer)
                         for _, shape in weights]
            out = pl.pallas_call(
                kernel,
                out_shape=jax.ShapeDtypeStruct((b_pad, Ap), f32),
                grid=grid,
                in_specs=in_specs,
                out_specs=pl.BlockSpec((b_tile, Ap), lambda i: (i, 0)),
                compiler_params=pltpu.CompilerParams(
                    dimension_semantics=("parallel",),   # batch tiles across v7x TCs
                    vmem_limit_bytes=vmem_limit),
            )(*args)
            break
        except Exception:
            if not single_buffer:
                raise
            # pl.Buffered(1) unsupported on this jax/libtpu -> default buffering.
    return out[:B, :A]


# ----------------------------------------------------------------------------
# Matched-precision pure-JAX emulation (same bf16 casts / same operand folding)
# — validates the kernel mechanics tightly.
# ----------------------------------------------------------------------------
def _emulated_forward(y, x, a, phi, *, lamda, rho, admm_iterations,
                      matmul_dtype=jnp.bfloat16):
    f32 = jnp.float32
    B = x.shape[0]
    x2 = jnp.reshape(x, (B, -1)).astype(f32)
    y2 = jnp.reshape(y, (B, -1)).astype(f32)
    A = a.shape[1]
    vmem_budget = min(int(_vmem_capacity_bytes() * 3 // 4), 100 << 20)
    ops = _prepare_operands(a, phi, rho=rho, matmul_dtype=matmul_dtype,
                            vmem_budget=vmem_budget)
    yb = _pad_axis(y2, 1, ops["Mp"])
    thr = float(lamda) / float(rho)
    if ops["use_gram"]:
        xh = _gram_iterations(yb, ops["a_s"], ops["a_k"], ops["phi_s"],
                              ops["gram"], thr=thr,
                              iterations=int(admm_iterations), unroll=True)
    else:
        xh = _direct_iterations(yb, ops["a_s"], ops["phi_t"], ops["phi_s"],
                                thr=thr, iterations=int(admm_iterations),
                                unroll=True)
    return jnp.clip(xh, jnp.min(x2), jnp.max(x2))[:, :A]


# ----------------------------------------------------------------------------
# Exact f32 reference (mirrors the PyTorch module, Precision.HIGHEST).
# ----------------------------------------------------------------------------
def _reference_forward(y, x, a, phi, *, lamda, rho, admm_iterations):
    f32 = jnp.float32
    B = x.shape[0]
    x2 = jnp.reshape(x, (B, -1)).astype(f32)
    y2 = jnp.reshape(y, (B, -1)).astype(f32)
    min_x, max_x = jnp.min(x2), jnp.max(x2)
    m = jnp.dot(a.T, a, precision=_HP) + rho * jnp.dot(phi.T, phi, precision=_HP)
    _, L, U = jax.scipy.linalg.lu(m)
    dl = jnp.diag(jnp.linalg.inv(L))          # einsum('aa,ba->ba') uses diagonals
    du = jnp.diag(jnp.linalg.inv(U))
    x0 = jnp.dot(y2, a, precision=_HP)
    z = jnp.zeros((B, phi.shape[0]), f32)
    u = jnp.zeros_like(z)
    x_hat = jnp.zeros_like(x0)
    thr = lamda / rho
    for _ in range(admm_iterations):
        x_L = dl * (x0 + rho * jnp.dot(z - u, phi, precision=_HP))
        x_hat = du * x_L
        fxu = jnp.dot(x_hat, phi.T, precision=_HP) + u
        z = jnp.sign(fxu) * jnp.maximum(jnp.zeros_like(fxu), jnp.abs(fxu) - thr)
        u = u + fxu - z
    return jnp.clip(x_hat, min_x, max_x)


# ----------------------------------------------------------------------------
# Smoke test
# ----------------------------------------------------------------------------
if __name__ == "__main__":
    LAMDA, RHO, ITERS = 1e-4, 1.0, 5

    def _run_case(seed, B, M, A, red):
        key = jax.random.PRNGKey(seed)
        k_a, k_phi, k_x, k_y = jax.random.split(key, 4)
        S = A * red
        # a = randn(M, A)/sqrt(M);  phi = kaiming_normal on (S, A) (std sqrt(2/A)).
        a = jax.random.normal(k_a, (M, A), jnp.float32) / jnp.sqrt(jnp.float32(M))
        phi = (jax.random.normal(k_phi, (S, A), jnp.float32)
               * jnp.sqrt(jnp.float32(2.0 / A)))
        x = jax.random.normal(k_x, (B, A), jnp.float32)   # signal (clamp bounds)
        y = jax.random.normal(k_y, (B, M), jnp.float32)   # measurements

        out = jax.block_until_ready(
            dad_forward(y, x, a, phi, lamda=LAMDA, rho=RHO,
                        admm_iterations=ITERS))
        assert out.shape == (B, A) and out.dtype == jnp.float32
        assert bool(jnp.all(jnp.isfinite(out)))

        # (1) Tight check vs. a pure-JAX emulation with identical bf16 operands.
        emu = jax.block_until_ready(
            _emulated_forward(y, x, a, phi, lamda=LAMDA, rho=RHO,
                              admm_iterations=ITERS))
        emu_err = float(jnp.max(jnp.abs(out - emu)))
        assert emu_err < 5e-2, f"kernel vs matched-precision emulation: {emu_err}"

        # (2) Loose sanity vs. the exact f32 module semantics: bf16 MXU operands
        #     and the unrolled ADMM chain amplify rounding (use
        #     matmul_dtype=jnp.float32 in dad_forward for full-f32 fidelity).
        ref = jax.block_until_ready(
            _reference_forward(y, x, a, phi, lamda=LAMDA, rho=RHO,
                               admm_iterations=ITERS))
        rel = float(jnp.max(jnp.abs(out - ref)) / (jnp.max(jnp.abs(ref)) + 1e-6))
        assert rel < 0.5, f"kernel vs f32 reference, relative: {rel}"

    _run_case(0, B=8, M=32, A=128, red=2)     # Gram form, single batch tile
    _run_case(1, B=24, M=32, A=128, red=3)    # direct form, 2 batch tiles
    print("KERNEL_OK")
</pallas_src>

<mosaic_0001>
module attributes {stable_mosaic.version = 11 : i64} {
  func.func @_dad_gram_kernel(%arg0: i32, %arg1: memref<2xf32, #tpu.memory_space<smem>>, %arg2: memref<8x128xf32, #tpu.memory_space<vmem>>, %arg3: memref<128x128xbf16, #tpu.memory_space<vmem>>, %arg4: memref<128x256xbf16, #tpu.memory_space<vmem>>, %arg5: memref<256x128xbf16, #tpu.memory_space<vmem>>, %arg6: memref<256x256xbf16, #tpu.memory_space<vmem>>, %arg7: memref<8x128xf32, #tpu.memory_space<vmem>>) attributes {dimension_semantics = [#tpu.dimension_semantics<parallel>], iteration_bounds = array<i64: 1>, scalar_prefetch = 0 : i64, scratch_operands = 0 : i64, tpu.core_type = #tpu.core_type<tc>, window_params = [{transform_indices = @transform_0, window_bounds = array<i64: 2>}, {transform_indices = @transform_1, window_bounds = array<i64: 8, 128>}, {pipeline_mode = #tpu.pipeline_mode<synchronous>, transform_indices = @transform_2, window_bounds = array<i64: 128, 128>}, {pipeline_mode = #tpu.pipeline_mode<synchronous>, transform_indices = @transform_3, window_bounds = array<i64: 128, 256>}, {pipeline_mode = #tpu.pipeline_mode<synchronous>, transform_indices = @transform_4, window_bounds = array<i64: 256, 128>}, {pipeline_mode = #tpu.pipeline_mode<synchronous>, transform_indices = @transform_5, window_bounds = array<i64: 256, 256>}, {transform_indices = @transform_6, window_bounds = array<i64: 8, 128>}]} {
    %c0 = arith.constant 0 : index
    %c0_0 = arith.constant 0 : index
    %0 = vector.load %arg2[%c0, %c0_0] : memref<8x128xf32, #tpu.memory_space<vmem>>, vector<8x128xf32>
    %c0_1 = arith.constant 0 : index
    %c0_2 = arith.constant 0 : index
    %1 = vector.load %arg3[%c0_1, %c0_2] : memref<128x128xbf16, #tpu.memory_space<vmem>>, vector<128x128xbf16>
    %c0_3 = arith.constant 0 : index
    %c0_4 = arith.constant 0 : index
    %2 = vector.load %arg4[%c0_3, %c0_4] : memref<128x256xbf16, #tpu.memory_space<vmem>>, vector<128x256xbf16>
    %c0_5 = arith.constant 0 : index
    %c0_6 = arith.constant 0 : index
    %3 = vector.load %arg5[%c0_5, %c0_6] : memref<256x128xbf16, #tpu.memory_space<vmem>>, vector<256x128xbf16>
    %c0_7 = arith.constant 0 : index
    %c0_8 = arith.constant 0 : index
    %4 = vector.load %arg6[%c0_7, %c0_8] : memref<256x256xbf16, #tpu.memory_space<vmem>>, vector<256x256xbf16>
    %5 = arith.truncf %0 : vector<8x128xf32> to vector<8x128xbf16>
    %cst = arith.constant dense<0.000000e+00> : vector<8x128xf32>
    %6 = tpu.matmul %5, %1, %cst {dimension_numbers = #tpu.dot_dimension_numbers<[1], [0], [0], [1], [0, 0, 1, 1], [], []>} : vector<8x128xbf16>, vector<128x128xbf16>, vector<8x128xf32> -> vector<8x128xf32>
    %cst_9 = arith.constant dense<0.000000e+00> : vector<8x256xf32>
    %7 = tpu.matmul %5, %2, %cst_9 {dimension_numbers = #tpu.dot_dimension_numbers<[1], [0], [0], [1], [0, 0, 1, 1], [], []>} : vector<8x128xbf16>, vector<128x256xbf16>, vector<8x256xf32> -> vector<8x256xf32>
    %cst_10 = arith.constant -9.99999974E-5 : f32
    %cst_11 = arith.constant 9.99999974E-5 : f32
    %8 = vector.broadcast %cst_10 : f32 to vector<8x256xf32>
    %9 = arith.maximumf %8, %7 : vector<8x256xf32>
    %10 = vector.broadcast %cst_11 : f32 to vector<8x256xf32>
    %11 = arith.minimumf %10, %9 : vector<8x256xf32>
    %12 = arith.subf %7, %11 : vector<8x256xf32>
    %13 = arith.subf %12, %11 : vector<8x256xf32>
    %14 = arith.truncf %13 : vector<8x256xf32> to vector<8x256xbf16>
    %cst_12 = arith.constant dense<0.000000e+00> : vector<8x256xf32>
    %15 = tpu.matmul %14, %4, %cst_12 {dimension_numbers = #tpu.dot_dimension_numbers<[1], [0], [0], [1], [0, 0, 1, 1], [], []>} : vector<8x256xbf16>, vector<256x256xbf16>, vector<8x256xf32> -> vector<8x256xf32>
    %16 = arith.addf %7, %15 : vector<8x256xf32>
    %17 = arith.addf %16, %11 : vector<8x256xf32>
    %cst_13 = arith.constant -9.99999974E-5 : f32
    %cst_14 = arith.constant 9.99999974E-5 : f32
    %18 = vector.broadcast %cst_13 : f32 to vector<8x256xf32>
    %19 = arith.maximumf %18, %17 : vector<8x256xf32>
    %20 = vector.broadcast %cst_14 : f32 to vector<8x256xf32>
    %21 = arith.minimumf %20, %19 : vector<8x256xf32>
    %22 = arith.subf %17, %21 : vector<8x256xf32>
    %23 = arith.addf %11, %21 : vector<8x256xf32>
    %24 = arith.subf %22, %23 : vector<8x256xf32>
    %25 = arith.truncf %24 : vector<8x256xf32> to vector<8x256xbf16>
    %cst_15 = arith.constant dense<0.000000e+00> : vector<8x256xf32>
    %26 = tpu.matmul %25, %4, %cst_15 {dimension_numbers = #tpu.dot_dimension_numbers<[1], [0], [0], [1], [0, 0, 1, 1], [], []>} : vector<8x256xbf16>, vector<256x256xbf16>, vector<8x256xf32> -> vector<8x256xf32>
    %27 = arith.addf %7, %26 : vector<8x256xf32>
    %28 = arith.addf %27, %23 : vector<8x256xf32>
    %cst_16 = arith.constant -9.99999974E-5 : f32
    %cst_17 = arith.constant 9.99999974E-5 : f32
    %29 = vector.broadcast %cst_16 : f32 to vector<8x256xf32>
    %30 = arith.maximumf %29, %28 : vector<8x256xf32>
    %31 = vector.broadcast %cst_17 : f32 to vector<8x256xf32>
    %32 = arith.minimumf %31, %30 : vector<8x256xf32>
    %33 = arith.subf %28, %32 : vector<8x256xf32>
    %34 = arith.addf %23, %32 : vector<8x256xf32>
    %35 = arith.subf %33, %34 : vector<8x256xf32>
    %36 = arith.truncf %35 : vector<8x256xf32> to vector<8x256xbf16>
    %cst_18 = arith.constant dense<0.000000e+00> : vector<8x256xf32>
    %37 = tpu.matmul %36, %4, %cst_18 {dimension_numbers = #tpu.dot_dimension_numbers<[1], [0], [0], [1], [0, 0, 1, 1], [], []>} : vector<8x256xbf16>, vector<256x256xbf16>, vector<8x256xf32> -> vector<8x256xf32>
    %38 = arith.addf %7, %37 : vector<8x256xf32>
    %39 = arith.addf %38, %34 : vector<8x256xf32>
    %cst_19 = arith.constant -9.99999974E-5 : f32
    %cst_20 = arith.constant 9.99999974E-5 : f32
    %40 = vector.broadcast %cst_19 : f32 to vector<8x256xf32>
    %41 = arith.maximumf %40, %39 : vector<8x256xf32>
    %42 = vector.broadcast %cst_20 : f32 to vector<8x256xf32>
    %43 = arith.minimumf %42, %41 : vector<8x256xf32>
    %44 = arith.subf %39, %43 : vector<8x256xf32>
    %45 = arith.addf %34, %43 : vector<8x256xf32>
    %46 = arith.subf %44, %45 : vector<8x256xf32>
    %47 = arith.truncf %46 : vector<8x256xf32> to vector<8x256xbf16>
    %cst_21 = arith.constant dense<0.000000e+00> : vector<8x128xf32>
    %48 = tpu.matmul %47, %3, %cst_21 {dimension_numbers = #tpu.dot_dimension_numbers<[1], [0], [0], [1], [0, 0, 1, 1], [], []>} : vector<8x256xbf16>, vector<256x128xbf16>, vector<8x128xf32> -> vector<8x128xf32>
    %49 = arith.addf %6, %48 : vector<8x128xf32>
    %c0_22 = arith.constant 0 : index
    %50 = memref.load %arg1[%c0_22] : memref<2xf32, #tpu.memory_space<smem>>
    %c1 = arith.constant 1 : index
    %51 = memref.load %arg1[%c1] : memref<2xf32, #tpu.memory_space<smem>>
    %52 = vector.broadcast %50 : f32 to vector<8x128xf32>
    %53 = arith.maximumf %52, %49 : vector<8x128xf32>
    %54 = vector.broadcast %51 : f32 to vector<8x128xf32>
    %55 = arith.minimumf %54, %53 : vector<8x128xf32>
    %c0_23 = arith.constant 0 : index
    %c0_24 = arith.constant 0 : index
    %56 = vector.load %arg7[%c0_23, %c0_24] : memref<8x128xf32, #tpu.memory_space<vmem>>, vector<8x128xf32>
    tpu.vector_store %arg7[%c0_23, %c0_24], %55 {strides = array<i32>} : memref<8x128xf32, #tpu.memory_space<vmem>>, vector<8x128xf32>,
    return
  }
  func.func @transform_0(%arg0: i32) -> i32 {
    %c0_i32 = arith.constant 0 : i32
    %c0_i32_0 = arith.constant 0 : i32
    return %c0_i32 : i32
  }
  func.func @transform_1(%arg0: i32) -> (i32, i32) {
    %c0_i32 = arith.constant 0 : i32
    %c0_i32_0 = arith.constant 0 : i32
    return %arg0, %c0_i32 : i32, i32
  }
  func.func @transform_2(%arg0: i32) -> (i32, i32) {
    %c0_i32 = arith.constant 0 : i32
    %c0_i32_0 = arith.constant 0 : i32
    %c0_i32_1 = arith.constant 0 : i32
    return %c0_i32, %c0_i32_0 : i32, i32
  }
  func.func @transform_3(%arg0: i32) -> (i32, i32) {
    %c0_i32 = arith.constant 0 : i32
    %c0_i32_0 = arith.constant 0 : i32
    %c0_i32_1 = arith.constant 0 : i32
    return %c0_i32, %c0_i32_0 : i32, i32
  }
  func.func @transform_4(%arg0: i32) -> (i32, i32) {
    %c0_i32 = arith.constant 0 : i32
    %c0_i32_0 = arith.constant 0 : i32
    %c0_i32_1 = arith.constant 0 : i32
    return %c0_i32, %c0_i32_0 : i32, i32
  }
  func.func @transform_5(%arg0: i32) -> (i32, i32) {
    %c0_i32 = arith.constant 0 : i32
    %c0_i32_0 = arith.constant 0 : i32
    %c0_i32_1 = arith.constant 0 : i32
    return %c0_i32, %c0_i32_0 : i32, i32
  }
  func.func @transform_6(%arg0: i32) -> (i32, i32) {
    %c0_i32 = arith.constant 0 : i32
    %c0_i32_0 = arith.constant 0 : i32
    return %arg0, %c0_i32 : i32, i32
  }
}

module attributes {stable_mosaic.version = 11 : i64} {
  func.func @_dad_gram_kernel(%arg0: i32, %arg1: memref<2xf32, #tpu.memory_space<smem>>, %arg2: memref<8x128xf32, #tpu.memory_space<vmem>>, %arg3: memref<128x128xbf16, #tpu.memory_space<vmem>>, %arg4: memref<128x256xbf16, #tpu.memory_space<vmem>>, %arg5: memref<256x128xbf16, #tpu.memory_space<vmem>>, %arg6: memref<256x256xbf16, #tpu.memory_space<vmem>>, %arg7: memref<8x128xf32, #tpu.memory_space<vmem>>) attributes {dimension_semantics = [#tpu.dimension_semantics<parallel>], iteration_bounds = array<i64: 1>, scalar_prefetch = 0 : i64, scratch_operands = 0 : i64, tpu.core_type = #tpu.core_type<tc>, window_params = [{transform_indices = @transform_0, window_bounds = array<i64: 2>}, {transform_indices = @transform_1, window_bounds = array<i64: 8, 128>}, {pipeline_mode = #tpu.pipeline_mode<synchronous>, transform_indices = @transform_2, window_bounds = array<i64: 128, 128>}, {pipeline_mode = #tpu.pipeline_mode<synchronous>, transform_indices = @transform_3, window_bounds = array<i64: 128, 256>}, {pipeline_mode = #tpu.pipeline_mode<synchronous>, transform_indices = @transform_4, window_bounds = array<i64: 256, 128>}, {pipeline_mode = #tpu.pipeline_mode<synchronous>, transform_indices = @transform_5, window_bounds = array<i64: 256, 256>}, {transform_indices = @transform_6, window_bounds = array<i64: 8, 128>}]} {
    %c0 = arith.constant 0 : index
    %c0_0 = arith.constant 0 : index
    %0 = vector.load %arg2[%c0, %c0_0] : memref<8x128xf32, #tpu.memory_space<vmem>>, vector<8x128xf32>
    %c0_1 = arith.constant 0 : index
    %c0_2 = arith.constant 0 : index
    %1 = vector.load %arg3[%c0_1, %c0_2] : memref<128x128xbf16, #tpu.memory_space<vmem>>, vector<128x128xbf16>
    %c0_3 = arith.constant 0 : index
    %c0_4 = arith.constant 0 : index
    %2 = vector.load %arg4[%c0_3, %c0_4] : memref<128x256xbf16, #tpu.memory_space<vmem>>, vector<128x256xbf16>
    %c0_5 = arith.constant 0 : index
    %c0_6 = arith.constant 0 : index
    %3 = vector.load %arg5[%c0_5, %c0_6] : memref<256x128xbf16, #tpu.memory_space<vmem>>, vector<256x128xbf16>
    %c0_7 = arith.constant 0 : index
    %c0_8 = arith.constant 0 : index
    %4 = vector.load %arg6[%c0_7, %c0_8] : memref<256x256xbf16, #tpu.memory_space<vmem>>, vector<256x256xbf16>
    %5 = arith.truncf %0 : vector<8x128xf32> to vector<8x128xbf16>
    %cst = arith.constant dense<0.000000e+00> : vector<8x128xf32>
    %6 = tpu.matmul %5, %1, %cst {dimension_numbers = #tpu.dot_dimension_numbers<[1], [0], [0], [1], [0, 0, 1, 1], [], []>} : vector<8x128xbf16>, vector<128x128xbf16>, vector<8x128xf32> -> vector<8x128xf32>
    %cst_9 = arith.constant dense<0.000000e+00> : vector<8x256xf32>
    %7 = tpu.matmul %5, %2, %cst_9 {dimension_numbers = #tpu.dot_dimension_numbers<[1], [0], [0], [1], [0, 0, 1, 1], [], []>} : vector<8x128xbf16>, vector<128x256xbf16>, vector<8x256xf32> -> vector<8x256xf32>
    %cst_10 = arith.constant -9.99999974E-5 : f32
    %cst_11 = arith.constant 9.99999974E-5 : f32
    %8 = vector.broadcast %cst_10 : f32 to vector<8x256xf32>
    %9 = arith.maximumf %8, %7 : vector<8x256xf32>
    %10 = vector.broadcast %cst_11 : f32 to vector<8x256xf32>
    %11 = arith.minimumf %10, %9 : vector<8x256xf32>
    %12 = arith.subf %7, %11 : vector<8x256xf32>
    %13 = arith.subf %12, %11 : vector<8x256xf32>
    %14 = arith.truncf %13 : vector<8x256xf32> to vector<8x256xbf16>
    %cst_12 = arith.constant dense<0.000000e+00> : vector<8x256xf32>
    %15 = tpu.matmul %14, %4, %cst_12 {dimension_numbers = #tpu.dot_dimension_numbers<[1], [0], [0], [1], [0, 0, 1, 1], [], []>} : vector<8x256xbf16>, vector<256x256xbf16>, vector<8x256xf32> -> vector<8x256xf32>
    %16 = arith.addf %7, %15 : vector<8x256xf32>
    %17 = arith.addf %16, %11 : vector<8x256xf32>
    %cst_13 = arith.constant -9.99999974E-5 : f32
    %cst_14 = arith.constant 9.99999974E-5 : f32
    %18 = vector.broadcast %cst_13 : f32 to vector<8x256xf32>
    %19 = arith.maximumf %18, %17 : vector<8x256xf32>
    %20 = vector.broadcast %cst_14 : f32 to vector<8x256xf32>
    %21 = arith.minimumf %20, %19 : vector<8x256xf32>
    %22 = arith.subf %17, %21 : vector<8x256xf32>
    %23 = arith.addf %11, %21 : vector<8x256xf32>
    %24 = arith.subf %22, %23 : vector<8x256xf32>
    %25 = arith.truncf %24 : vector<8x256xf32> to vector<8x256xbf16>
    %cst_15 = arith.constant dense<0.000000e+00> : vector<8x256xf32>
    %26 = tpu.matmul %25, %4, %cst_15 {dimension_numbers = #tpu.dot_dimension_numbers<[1], [0], [0], [1], [0, 0, 1, 1], [], []>} : vector<8x256xbf16>, vector<256x256xbf16>, vector<8x256xf32> -> vector<8x256xf32>
    %27 = arith.addf %7, %26 : vector<8x256xf32>
    %28 = arith.addf %27, %23 : vector<8x256xf32>
    %cst_16 = arith.constant -9.99999974E-5 : f32
    %cst_17 = arith.constant 9.99999974E-5 : f32
    %29 = vector.broadcast %cst_16 : f32 to vector<8x256xf32>
    %30 = arith.maximumf %29, %28 : vector<8x256xf32>
    %31 = vector.broadcast %cst_17 : f32 to vector<8x256xf32>
    %32 = arith.minimumf %31, %30 : vector<8x256xf32>
    %33 = arith.subf %28, %32 : vector<8x256xf32>
    %34 = arith.addf %23, %32 : vector<8x256xf32>
    %35 = arith.subf %33, %34 : vector<8x256xf32>
    %36 = arith.truncf %35 : vector<8x256xf32> to vector<8x256xbf16>
    %cst_18 = arith.constant dense<0.000000e+00> : vector<8x256xf32>
    %37 = tpu.matmul %36, %4, %cst_18 {dimension_numbers = #tpu.dot_dimension_numbers<[1], [0], [0], [1], [0, 0, 1, 1], [], []>} : vector<8x256xbf16>, vector<256x256xbf16>, vector<8x256xf32> -> vector<8x256xf32>
    %38 = arith.addf %7, %37 : vector<8x256xf32>
    %39 = arith.addf %38, %34 : vector<8x256xf32>
    %cst_19 = arith.constant -9.99999974E-5 : f32
    %cst_20 = arith.constant 9.99999974E-5 : f32
    %40 = vector.broadcast %cst_19 : f32 to vector<8x256xf32>
    %41 = arith.maximumf %40, %39 : vector<8x256xf32>
    %42 = vector.broadcast %cst_20 : f32 to vector<8x256xf32>
    %43 = arith.minimumf %42, %41 : vector<8x256xf32>
    %44 = arith.subf %39, %43 : vector<8x256xf32>
    %45 = arith.addf %34, %43 : vector<8x256xf32>
    %46 = arith.subf %44, %45 : vector<8x256xf32>
    %47 = arith.truncf %46 : vector<8x256xf32> to vector<8x256xbf16>
    %cst_21 = arith.constant dense<0.000000e+00> : vector<8x128xf32>
    %48 = tpu.matmul %47, %3, %cst_21 {dimension_numbers = #tpu.dot_dimension_numbers<[1], [0], [0], [1], [0, 0, 1, 1], [], []>} : vector<8x256xbf16>, vector<256x128xbf16>, vector<8x128xf32> -> vector<8x128xf32>
    %49 = arith.addf %6, %48 : vector<8x128xf32>
    %c0_22 = arith.constant 0 : index
    %50 = memref.load %arg1[%c0_22] : memref<2xf32, #tpu.memory_space<smem>>
    %c1 = arith.constant 1 : index
    %51 = memref.load %arg1[%c1] : memref<2xf32, #tpu.memory_space<smem>>
    %52 = vector.broadcast %50 : f32 to vector<8x128xf32>
    %53 = arith.maximumf %52, %49 : vector<8x128xf32>
    %54 = vector.broadcast %51 : f32 to vector<8x128xf32>
    %55 = arith.minimumf %54, %53 : vector<8x128xf32>
    %c0_23 = arith.constant 0 : index
    %c0_24 = arith.constant 0 : index
    %56 = vector.load %arg7[%c0_23, %c0_24] : memref<8x128xf32, #tpu.memory_space<vmem>>, vector<8x128xf32>
    tpu.vector_store %arg7[%c0_23, %c0_24], %55 {strides = array<i32>} : memref<8x128xf32, #tpu.memory_space<vmem>>, vector<8x128xf32>,
    return
  }
  func.func @transform_0(%arg0: i32) -> i32 {
    %c0_i32 = arith.constant 0 : i32
    %c0_i32_0 = arith.constant 0 : i32
    return %c0_i32 : i32
  }
  func.func @transform_1(%arg0: i32) -> (i32, i32) {
    %c0_i32 = arith.constant 0 : i32
    %c0_i32_0 = arith.constant 0 : i32
    return %arg0, %c0_i32 : i32, i32
  }
  func.func @transform_2(%arg0: i32) -> (i32, i32) {
    %c0_i32 = arith.constant 0 : i32
    %c0_i32_0 = arith.constant 0 : i32
    %c0_i32_1 = arith.constant 0 : i32
    return %c0_i32, %c0_i32_0 : i32, i32
  }
  func.func @transform_3(%arg0: i32) -> (i32, i32) {
    %c0_i32 = arith.constant 0 : i32
    %c0_i32_0 = arith.constant 0 : i32
    %c0_i32_1 = arith.constant 0 : i32
    return %c0_i32, %c0_i32_0 : i32, i32
  }
  func.func @transform_4(%arg0: i32) -> (i32, i32) {
    %c0_i32 = arith.constant 0 : i32
    %c0_i32_0 = arith.constant 0 : i32
    %c0_i32_1 = arith.constant 0 : i32
    return %c0_i32, %c0_i32_0 : i32, i32
  }
  func.func @transform_5(%arg0: i32) -> (i32, i32) {
    %c0_i32 = arith.constant 0 : i32
    %c0_i32_0 = arith.constant 0 : i32
    %c0_i32_1 = arith.constant 0 : i32
    return %c0_i32, %c0_i32_0 : i32, i32
  }
  func.func @transform_6(%arg0: i32) -> (i32, i32) {
    %c0_i32 = arith.constant 0 : i32
    %c0_i32_0 = arith.constant 0 : i32
    return %arg0, %c0_i32 : i32, i32
  }
}

</mosaic_0001>

<llo_original>
// kernel: tpu_custom_call.1
$region0: #{tpu_custom_call.1}
  #allocation0 [shape = 'u32[]', space=smem, size = 0x4, offset = 0x4, fixed_abs, tag = 'smem constant byte address 0x4 - core index']
  #allocation1 [shape = 'u32[144,128]{1,0:T(1,128)}', space=vmem, size = 0x12000, scoped, tag = 'internal scratch']
  %s0 = inlined_call_operand.hbm [shape: f32[2], index: 0, kind: input, shape index: {}]
  %s1 = inlined_call_operand.hbm [shape: f32[8,128], index: 1, kind: input, shape index: {}]
  %s2 = inlined_call_operand.hbm [shape: bf16[128,128], index: 2, kind: input, shape index: {}]
  %s3 = inlined_call_operand.hbm [shape: bf16[128,256], index: 3, kind: input, shape index: {}]
  %s4 = inlined_call_operand.hbm [shape: bf16[256,128], index: 4, kind: input, shape index: {}]
  %s5 = inlined_call_operand.hbm [shape: bf16[256,256], index: 5, kind: input, shape index: {}]
  %s6 = inlined_call_operand.hbm [shape: f32[8,128], index: 6, kind: output, shape index: {}]
  %s7 = sld [smem:[#allocation0]]
  $region58: #{tpu_custom_call.1} parent=0
    _
  %s9 = ssub.s32 1, %s7
  %s10 = scalar_select 0, %s9, %s7
  $region1: #{tpu_custom_call.1} parent=0
    #allocation2 [shape = 'u8[512]{0}', space=smem, size = 0x200, scoped, tag = 'input window, operand 0, single buffered']
    #allocation3 [shape = 's32[1]{0}', space=sflag, size = 0x4, scoped, tag = 'scoped memory for tpu_custom_call.1']
    #allocation4 [shape = 's32[1]{0}', space=sflag, size = 0x4, scoped, tag = 'scoped memory for tpu_custom_call.1']
    #allocation5 [shape = 's32[1]{0}', space=sflag, size = 0x4, scoped, tag = 'scoped memory for tpu_custom_call.1']
    #allocation6 [shape = 'u8[4096]{0}', space=vmem, size = 0x1000, scoped, tag = 'input window, operand 1, single buffered']
    #allocation7 [shape = 'u8[32768]{0}', space=vmem, size = 0x8000, scoped, tag = 'input window, operand 2, single buffered']
    #allocation8 [shape = 's32[1]{0}', space=sflag, size = 0x4, scoped, tag = 'scoped memory for tpu_custom_call.1']
    #allocation9 [shape = 'u8[65536]{0}', space=vmem, size = 0x10000, scoped, tag = 'input window, operand 3, single buffered']
    #allocation10 [shape = 'u8[65536]{0}', space=vmem, size = 0x10000, scoped, tag = 'input window, operand 4, single buffered']
    #allocation11 [shape = 's32[1]{0}', space=sflag, size = 0x4, scoped, tag = 'scoped memory for tpu_custom_call.1']
    #allocation12 [shape = 'u8[131072]{0}', space=vmem, size = 0x20000, scoped, tag = 'input window, operand 5, single buffered']
    #allocation13 [shape = 'u8[4096]{0}', space=vmem, size = 0x1000, scoped, tag = 'output window, operand 0, single buffered']
    %11 = vsyncpa [#allocation5], 0
    %12 = vsyncpa [#allocation3], 0
    %13 = vsyncpa [#allocation8], 0
    %14 = vsyncpa [#allocation11], 0
    %15 = vsyncpa [#allocation4], 0
    // Predicated region
    $region2: #{tpu_custom_call.1} parent=1 // pred_check
      _
    $region3: #{tpu_custom_call.1} parent=1 // pred_check_branch
      %17 = sbr.rel (0) target = $region5
    $region4: #{tpu_custom_call.1} parent=1 // pred_region
      %s19 = ssub.s32 16, 16
      %20 = vsyncadd [#allocation5], %s19
      %23 = dma.hbm_to_smem %s0, 16, [#allocation2], [#allocation5]
    $region5: #{tpu_custom_call.1} parent=1 // pred_fallthru
      _
    // Predicated region
    $region6: #{tpu_custom_call.1} parent=1 // pred_check
      _
    $region7: #{tpu_custom_call.1} parent=1 // pred_check_branch
      %25 = sbr.rel (0) target = $region9
    $region8: #{tpu_custom_call.1} parent=1 // pred_region
      %s27 = ssub.s32 128, 128
      %28 = vsyncadd [#allocation3], %s27
      %s30 = sshll.u32 [#allocation6], 4
      %s31 = int_to_ptr.vmem [resolvable:$true] %s30
      %33 = dma.hbm_to_vmem [thread:$0]  %s1, 128, %s31, [#allocation3]
    $region9: #{tpu_custom_call.1} parent=1 // pred_fallthru
      _
    // Predicated region
    $region10: #{tpu_custom_call.1} parent=1 // pred_check
      _
    $region11: #{tpu_custom_call.1} parent=1 // pred_check_branch
      %35 = sbr.rel (0) target = $region13
    $region12: #{tpu_custom_call.1} parent=1 // pred_region
      %s37 = ssub.s32 1024, 1024
      %38 = vsyncadd [#allocation8], %s37
      %s39 = sshll.u32 [#allocation7], 4
      %s40 = int_to_ptr.vmem [resolvable:$true] %s39
      %45 = dma.hbm_to_vmem [thread:$0]  %s2, 1024, %s40, [#allocation8], 64, 64, 4
    $region13: #{tpu_custom_call.1} parent=1 // pred_fallthru
      _
    // Predicated region
    $region14: #{tpu_custom_call.1} parent=1 // pred_check
      _
    $region15: #{tpu_custom_call.1} parent=1 // pred_check_branch
      %47 = sbr.rel (0) target = $region17
    $region16: #{tpu_custom_call.1} parent=1 // pred_region
      %s49 = ssub.s32 2048, 2048
      %50 = vsyncadd [#allocation8], %s49
      %s51 = sshll.u32 [#allocation9], 4
      %s52 = int_to_ptr.vmem [resolvable:$true] %s51
      %57 = dma.hbm_to_vmem [thread:$0]  %s3, 2048, %s52, [#allocation8], 128, 128, 8
    $region17: #{tpu_custom_call.1} parent=1 // pred_fallthru
      _
    // Predicated region
    $region18: #{tpu_custom_call.1} parent=1 // pred_check
      _
    $region19: #{tpu_custom_call.1} parent=1 // pred_check_branch
      %59 = sbr.rel (0) target = $region21
    $region20: #{tpu_custom_call.1} parent=1 // pred_region
      %s61 = ssub.s32 2048, 2048
      %62 = vsyncadd [#allocation11], %s61
      %s63 = sshll.u32 [#allocation10], 4
      %s64 = int_to_ptr.vmem [resolvable:$true] %s63
      %69 = dma.hbm_to_vmem [thread:$0]  %s4, 2048, %s64, [#allocation11], 64, 64, 4
    $region21: #{tpu_custom_call.1} parent=1 // pred_fallthru
      _
    // Predicated region
    $region22: #{tpu_custom_call.1} parent=1 // pred_check
      _
    $region23: #{tpu_custom_call.1} parent=1 // pred_check_branch
      %71 = sbr.rel (0) target = $region25
    $region24: #{tpu_custom_call.1} parent=1 // pred_region
      %s73 = ssub.s32 4096, 4096
      %74 = vsyncadd [#allocation11], %s73
      %s75 = sshll.u32 [#allocation12], 4
      %s76 = int_to_ptr.vmem [resolvable:$true] %s75
      %81 = dma.hbm_to_vmem [thread:$0]  %s5, 4096, %s76, [#allocation11], 128, 128, 8
    $region25: #{tpu_custom_call.1} parent=1 // pred_fallthru
      _
    // Predicated region
    $region26: #{tpu_custom_call.1} parent=1 // pred_check
      _
    $region27: #{tpu_custom_call.1} parent=1 // pred_check_branch
      %83 = sbr.rel (0) target = $region29
    $region28: #{tpu_custom_call.1} parent=1 // pred_region
      %84 = dma.done [#allocation5], 16
    $region29: #{tpu_custom_call.1} parent=1 // pred_fallthru
      _
    // Predicated region
    $region30: #{tpu_custom_call.1} parent=1 // pred_check
      _
    $region31: #{tpu_custom_call.1} parent=1 // pred_check_branch
      %86 = sbr.rel (0) target = $region33
    $region32: #{tpu_custom_call.1} parent=1 // pred_region
      %87 = dma.done [#allocation3], 128
    $region33: #{tpu_custom_call.1} parent=1 // pred_fallthru
      _
    // Predicated region
    $region34: #{tpu_custom_call.1} parent=1 // pred_check
      _
    $region35: #{tpu_custom_call.1} parent=1 // pred_check_branch
      %89 = sbr.rel (0) target = $region37
    $region36: #{tpu_custom_call.1} parent=1 // pred_region
      %90 = dma.done [#allocation8], 1024
    $region37: #{tpu_custom_call.1} parent=1 // pred_fallthru
      _
    // Predicated region
    $region38: #{tpu_custom_call.1} parent=1 // pred_check
      _
    $region39: #{tpu_custom_call.1} parent=1 // pred_check_branch
      %92 = sbr.rel (0) target = $region41
    $region40: #{tpu_custom_call.1} parent=1 // pred_region
      %93 = dma.done [#allocation8], 2048
    $region41: #{tpu_custom_call.1} parent=1 // pred_fallthru
      _
    // Predicated region
    $region42: #{tpu_custom_call.1} parent=1 // pred_check
      _
    $region43: #{tpu_custom_call.1} parent=1 // pred_check_branch
      %95 = sbr.rel (0) target = $region45
    $region44: #{tpu_custom_call.1} parent=1 // pred_region
      %96 = dma.done [#allocation11], 2048
    $region45: #{tpu_custom_call.1} parent=1 // pred_fallthru
      _
    // Predicated region
    $region46: #{tpu_custom_call.1} parent=1 // pred_check
      _
    $region47: #{tpu_custom_call.1} parent=1 // pred_check_branch
      %98 = sbr.rel (0) target = $region49
    $region48: #{tpu_custom_call.1} parent=1 // pred_region
      %99 = dma.done [#allocation11], 4096
    $region49: #{tpu_custom_call.1} parent=1 // pred_fallthru
      _
    %100 = sfence
    %v102 = vld [vmem:[#allocation6] sm:$0xff]
    %v103 = vld [vmem:[#allocation7] sm:$0xf]
    %v104 = vld [vmem:[#allocation7 + $0x4] sm:$0xf]
    %v105 = vld [vmem:[#allocation7 + $0x8] sm:$0xf]
    %v106 = vld [vmem:[#allocation7 + $0xc] sm:$0xf]
    %v107 = vld [vmem:[#allocation7 + $0x10] sm:$0xf]
    %v108 = vld [vmem:[#allocation7 + $0x14] sm:$0xf]
    %v109 = vld [vmem:[#allocation7 + $0x18] sm:$0xf]
    %v110 = vld [vmem:[#allocation7 + $0x1c] sm:$0xf]
    %v111 = vld [vmem:[#allocation7 + $0x20] sm:$0xf]
    %v112 = vld [vmem:[#allocation7 + $0x24] sm:$0xf]
    %v113 = vld [vmem:[#allocation7 + $0x28] sm:$0xf]
    %v114 = vld [vmem:[#allocation7 + $0x2c] sm:$0xf]
    %v115 = vld [vmem:[#allocation7 + $0x30] sm:$0xf]
    %v116 = vld [vmem:[#allocation7 + $0x34] sm:$0xf]
    %v117 = vld [vmem:[#allocation7 + $0x38] sm:$0xf]
    %v118 = vld [vmem:[#allocation7 + $0x3c] sm:$0xf]
    %v119 = vld [vmem:[#allocation9] sm:$0xff]
    %v120 = vld [vmem:[#allocation9 + $0x8] sm:$0xff]
    %v121 = vld [vmem:[#allocation9 + $0x10] sm:$0xff]
    %v122 = vld [vmem:[#allocation9 + $0x18] sm:$0xff]
    %v123 = vld [vmem:[#allocation9 + $0x20] sm:$0xff]
    %v124 = vld [vmem:[#allocation9 + $0x28] sm:$0xff]
    %v125 = vld [vmem:[#allocation9 + $0x30] sm:$0xff]
    %v126 = vld [vmem:[#allocation9 + $0x38] sm:$0xff]
    %v127 = vld [vmem:[#allocation9 + $0x40] sm:$0xff]
    %v128 = vld [vmem:[#allocation9 + $0x48] sm:$0xff]
    %v129 = vld [vmem:[#allocation9 + $0x50] sm:$0xff]
    %v130 = vld [vmem:[#allocation9 + $0x58] sm:$0xff]
    %v131 = vld [vmem:[#allocation9 + $0x60] sm:$0xff]
    %v132 = vld [vmem:[#allocation9 + $0x68] sm:$0xff]
    %v133 = vld [vmem:[#allocation9 + $0x70] sm:$0xff]
    %v134 = vld [vmem:[#allocation9 + $0x78] sm:$0xff]
    %v135 = vld [vmem:[#allocation10] sm:$0xf]
    %v136 = vld [vmem:[#allocation10 + $0x4] sm:$0xf]
    %v137 = vld [vmem:[#allocation10 + $0x8] sm:$0xf]
    %v138 = vld [vmem:[#allocation10 + $0xc] sm:$0xf]
    %v139 = vld [vmem:[#allocation10 + $0x10] sm:$0xf]
    %v140 = vld [vmem:[#allocation10 + $0x14] sm:$0xf]
    %v141 = vld [vmem:[#allocation10 + $0x18] sm:$0xf]
    %v142 = vld [vmem:[#allocation10 + $0x1c] sm:$0xf]
    %v143 = vld [vmem:[#allocation10 + $0x20] sm:$0xf]
    %v144 = vld [vmem:[#allocation10 + $0x24] sm:$0xf]
    %v145 = vld [vmem:[#allocation10 + $0x28] sm:$0xf]
    %v146 = vld [vmem:[#allocation10 + $0x2c] sm:$0xf]
    %v147 = vld [vmem:[#allocation10 + $0x30] sm:$0xf]
    %v148 = vld [vmem:[#allocation10 + $0x34] sm:$0xf]
    %v149 = vld [vmem:[#allocation10 + $0x38] sm:$0xf]
    %v150 = vld [vmem:[#allocation10 + $0x3c] sm:$0xf]
    %v151 = vld [vmem:[#allocation10 + $0x40] sm:$0xf]
    %v152 = vld [vmem:[#allocation10 + $0x44] sm:$0xf]
    %v153 = vld [vmem:[#allocation10 + $0x48] sm:$0xf]
    %v154 = vld [vmem:[#allocation10 + $0x4c] sm:$0xf]
    %v155 = vld [vmem:[#allocation10 + $0x50] sm:$0xf]
    %v156 = vld [vmem:[#allocation10 + $0x54] sm:$0xf]
    %v157 = vld [vmem:[#allocation10 + $0x58] sm:$0xf]
    %v158 = vld [vmem:[#allocation10 + $0x5c] sm:$0xf]
    %v159 = vld [vmem:[#allocation10 + $0x60] sm:$0xf]
    %v160 = vld [vmem:[#allocation10 + $0x64] sm:$0xf]
    %v161 = vld [vmem:[#allocation10 + $0x68] sm:$0xf]
    %v162 = vld [vmem:[#allocation10 + $0x6c] sm:$0xf]
    %v163 = vld [vmem:[#allocation10 + $0x70] sm:$0xf]
    %v164 = vld [vmem:[#allocation10 + $0x74] sm:$0xf]
    %v165 = vld [vmem:[#allocation10 + $0x78] sm:$0xf]
    %v166 = vld [vmem:[#allocation10 + $0x7c] sm:$0xf]
    %v167 = vld [vmem:[#allocation12] sm:$0xff]
    %v168 = vld [vmem:[#allocation12 + $0x8] sm:$0xff]
    %v169 = vld [vmem:[#allocation12 + $0x10] sm:$0xff]
    %v170 = vld [vmem:[#allocation12 + $0x18] sm:$0xff]
    %v171 = vld [vmem:[#allocation12 + $0x20] sm:$0xff]
    %v172 = vld [vmem:[#allocation12 + $0x28] sm:$0xff]
    %v173 = vld [vmem:[#allocation12 + $0x30] sm:$0xff]
    %v174 = vld [vmem:[#allocation12 + $0x38] sm:$0xff]
    %v175 = vld [vmem:[#allocation12 + $0x40] sm:$0xff]
    %v176 = vld [vmem:[#allocation12 + $0x48] sm:$0xff]
    %v177 = vld [vmem:[#allocation12 + $0x50] sm:$0xff]
    %v178 = vld [vmem:[#allocation12 + $0x58] sm:$0xff]
    %v179 = vld [vmem:[#allocation12 + $0x60] sm:$0xff]
    %v180 = vld [vmem:[#allocation12 + $0x68] sm:$0xff]
    %v181 = vld [vmem:[#allocation12 + $0x70] sm:$0xff]
    %v182 = vld [vmem:[#allocation12 + $0x78] sm:$0xff]
    %v183 = vld [vmem:[#allocation12 + $0x80] sm:$0xff]
    %v184 = vld [vmem:[#allocation12 + $0x88] sm:$0xff]
    %v185 = vld [vmem:[#allocation12 + $0x90] sm:$0xff]
    %v186 = vld [vmem:[#allocation12 + $0x98] sm:$0xff]
    %v187 = vld [vmem:[#allocation12 + $0xa0] sm:$0xff]
    %v188 = vld [vmem:[#allocation12 + $0xa8] sm:$0xff]
    %v189 = vld [vmem:[#allocation12 + $0xb0] sm:$0xff]
    %v190 = vld [vmem:[#allocation12 + $0xb8] sm:$0xff]
    %v191 = vld [vmem:[#allocation12 + $0xc0] sm:$0xff]
    %v192 = vld [vmem:[#allocation12 + $0xc8] sm:$0xff]
    %v193 = vld [vmem:[#allocation12 + $0xd0] sm:$0xff]
    %v194 = vld [vmem:[#allocation12 + $0xd8] sm:$0xff]
    %v195 = vld [vmem:[#allocation12 + $0xe0] sm:$0xff]
    %v196 = vld [vmem:[#allocation12 + $0xe8] sm:$0xff]
    %v197 = vld [vmem:[#allocation12 + $0xf0] sm:$0xff]
    %v198 = vld [vmem:[#allocation12 + $0xf8] sm:$0xff]
    %v199 = vpack.c.bf16 %v102, %v102
    %v216 = vunpack.c.l.b16 %v119
    %v217 = vunpack.c.h.b16 %v119
    %v218 = vunpack.c.l.b16 %v120
    %v219 = vunpack.c.h.b16 %v120
    %v220 = vunpack.c.l.b16 %v121
    %v221 = vunpack.c.h.b16 %v121
    %v222 = vunpack.c.l.b16 %v122
    %v223 = vunpack.c.h.b16 %v122
    %v224 = vunpack.c.l.b16 %v123
    %v225 = vunpack.c.h.b16 %v123
    %v226 = vunpack.c.l.b16 %v124
    %v227 = vunpack.c.h.b16 %v124
    %v228 = vunpack.c.l.b16 %v125
    %v229 = vunpack.c.h.b16 %v125
    %v230 = vunpack.c.l.b16 %v126
    %v231 = vunpack.c.h.b16 %v126
    %v232 = vunpack.c.l.b16 %v127
    %v233 = vunpack.c.h.b16 %v127
    %v234 = vunpack.c.l.b16 %v128
    %v235 = vunpack.c.h.b16 %v128
    %v236 = vunpack.c.l.b16 %v129
    %v237 = vunpack.c.h.b16 %v129
    %v238 = vunpack.c.l.b16 %v130
    %v239 = vunpack.c.h.b16 %v130
    %v240 = vunpack.c.l.b16 %v131
    %v241 = vunpack.c.h.b16 %v131
    %v242 = vunpack.c.l.b16 %v132
    %v243 = vunpack.c.h.b16 %v132
    %v244 = vunpack.c.l.b16 %v133
    %v245 = vunpack.c.h.b16 %v133
    %v246 = vunpack.c.l.b16 %v134
    %v247 = vunpack.c.h.b16 %v134
    %v248 = vpack.c.b16 %v218, %v216
    %v249 = vpack.c.b16 %v219, %v217
    %v250 = vpack.c.b16 %v222, %v220
    %v251 = vpack.c.b16 %v223, %v221
    %v252 = vpack.c.b16 %v226, %v224
    %v253 = vpack.c.b16 %v227, %v225
    %v254 = vpack.c.b16 %v230, %v228
    %v255 = vpack.c.b16 %v231, %v229
    %v256 = vpack.c.b16 %v234, %v232
    %v257 = vpack.c.b16 %v235, %v233
    %v258 = vpack.c.b16 %v238, %v236
    %v259 = vpack.c.b16 %v239, %v237
    %v260 = vpack.c.b16 %v242, %v240
    %v261 = vpack.c.b16 %v243, %v241
    %v262 = vpack.c.b16 %v246, %v244
    %v263 = vpack.c.b16 %v247, %v245
    %280 = vmatprep.subr.bf16.mxu0 %v249
    %281 = vmatpush1.bf16.msra.mxu0 %v248
    %282 = vmatprep.subr.bf16.mxu0 %v251
    %283 = vmatpush1.bf16.msra.mxu0 %v250
    %284 = vmatprep.subr.bf16.mxu0 %v253
    %285 = vmatpush1.bf16.msra.mxu0 %v252
    %286 = vmatprep.subr.bf16.mxu0 %v255
    %287 = vmatpush1.bf16.msra.mxu0 %v254
    %288 = vmatprep.subr.bf16.mxu0 %v257
    %289 = vmatpush1.bf16.msra.mxu0 %v256
    %290 = vmatprep.subr.bf16.mxu0 %v259
    %291 = vmatpush1.bf16.msra.mxu0 %v258
    %292 = vmatprep.subr.bf16.mxu0 %v261
    %293 = vmatpush1.bf16.msra.mxu0 %v260
    %294 = vmatprep.subr.bf16.mxu0 %v263
    %295 = vmatpush1.bf16.msra.mxu0 %v262
    %296 = vmatprep.subr.bf16.mxu0 0
    %297 = vmatpush1.bf16.msra.mxu0 0
    %298 = vmatprep.subr.bf16.mxu0 0
    %299 = vmatpush1.bf16.msra.mxu0 0
    %300 = vmatprep.subr.bf16.mxu0 0
    %301 = vmatpush1.bf16.msra.mxu0 0
    %302 = vmatprep.subr.bf16.mxu0 0
    %303 = vmatpush1.bf16.msra.mxu0 0
    %304 = vmatprep.subr.bf16.mxu0 0
    %305 = vmatpush1.bf16.msra.mxu0 0
    %306 = vmatprep.subr.bf16.mxu0 0
    %307 = vmatpush1.bf16.msra.mxu0 0
    %308 = vmatprep.subr.bf16.mxu0 0
    %309 = vmatpush1.bf16.msra.mxu0 0
    %310 = vmatprep.subr.bf16.mxu0 0
    %311 = vmatpush1.bf16.msra.mxu0 0
    %312 = vmatprep.mubr.bf16.mxu0 0
    %313 = vmatmul.mubr.bf16.gmra.mrb[0].mxu0 %v199
    %v314 = vpop.f32.mrb[0].mxu0
    %v315 = vadd.f32 0.0, %v314
    %v316 = vpop.f32.mrb[0].mxu0
    %v317 = vadd.f32 0.0, %v316
    %v318 = vpop.f32.mrb[0].mxu0
    %v319 = vpop.f32.mrb[0].mxu0
    %320 = vdwg.mxu0
    %v321 = vmax.f32 %v315, -0.0001
    %v322 = vmax.f32 %v317, -0.0001
    %v323 = vmin.f32 %v321, 0.0001
    %v324 = vmin.f32 %v322, 0.0001
    %v325 = vsub.f32 %v315, %v323
    %v326 = vsub.f32 %v317, %v324
    %v327 = vsub.f32 %v325, %v323
    %v328 = vsub.f32 %v326, %v324
    %v329 = vpack.c.bf16 %v327, %v327
    %v330 = vpack.c.bf16 %v328, %v328
    %v363 = vunpack.c.l.b16 %v167
    %v364 = vunpack.c.h.b16 %v167
    %v365 = vunpack.c.l.b16 %v168
    %v366 = vunpack.c.h.b16 %v168
    %v367 = vunpack.c.l.b16 %v169
    %v368 = vunpack.c.h.b16 %v169
    %v369 = vunpack.c.l.b16 %v170
    %v370 = vunpack.c.h.b16 %v170
    %v371 = vunpack.c.l.b16 %v171
    %v372 = vunpack.c.h.b16 %v171
    %v373 = vunpack.c.l.b16 %v172
    %v374 = vunpack.c.h.b16 %v172
    %v375 = vunpack.c.l.b16 %v173
    %v376 = vunpack.c.h.b16 %v173
    %v377 = vunpack.c.l.b16 %v174
    %v378 = vunpack.c.h.b16 %v174
    %v379 = vunpack.c.l.b16 %v175
    %v380 = vunpack.c.h.b16 %v175
    %v381 = vunpack.c.l.b16 %v176
    %v382 = vunpack.c.h.b16 %v176
    %v383 = vunpack.c.l.b16 %v177
    %v384 = vunpack.c.h.b16 %v177
    %v385 = vunpack.c.l.b16 %v178
    %v386 = vunpack.c.h.b16 %v178
    %v387 = vunpack.c.l.b16 %v179
    %v388 = vunpack.c.h.b16 %v179
    %v389 = vunpack.c.l.b16 %v180
    %v390 = vunpack.c.h.b16 %v180
    %v391 = vunpack.c.l.b16 %v181
    %v392 = vunpack.c.h.b16 %v181
    %v393 = vunpack.c.l.b16 %v182
    %v394 = vunpack.c.h.b16 %v182
    %v395 = vunpack.c.l.b16 %v183
    %v396 = vunpack.c.h.b16 %v183
    %v397 = vunpack.c.l.b16 %v184
    %v398 = vunpack.c.h.b16 %v184
    %v399 = vunpack.c.l.b16 %v185
    %v400 = vunpack.c.h.b16 %v185
    %v401 = vunpack.c.l.b16 %v186
    %v402 = vunpack.c.h.b16 %v186
    %v403 = vunpack.c.l.b16 %v187
    %v404 = vunpack.c.h.b16 %v187
    %v405 = vunpack.c.l.b16 %v188
    %v406 = vunpack.c.h.b16 %v188
    %v407 = vunpack.c.l.b16 %v189
    %v408 = vunpack.c.h.b16 %v189
    %v409 = vunpack.c.l.b16 %v190
    %v410 = vunpack.c.h.b16 %v190
    %v411 = vunpack.c.l.b16 %v191
    %v412 = vunpack.c.h.b16 %v191
    %v413 = vunpack.c.l.b16 %v192
    %v414 = vunpack.c.h.b16 %v192
    %v415 = vunpack.c.l.b16 %v193
    %v416 = vunpack.c.h.b16 %v193
    %v417 = vunpack.c.l.b16 %v194
    %v418 = vunpack.c.h.b16 %v194
    %v419 = vunpack.c.l.b16 %v195
    %v420 = vunpack.c.h.b16 %v195
    %v421 = vunpack.c.l.b16 %v196
    %v422 = vunpack.c.h.b16 %v196
    %v423 = vunpack.c.l.b16 %v197
    %v424 = vunpack.c.h.b16 %v197
    %v425 = vunpack.c.l.b16 %v198
    %v426 = vunpack.c.h.b16 %v198
    %v427 = vpack.c.b16 %v365, %v363
    %v428 = vpack.c.b16 %v366, %v364
    %v429 = vpack.c.b16 %v369, %v367
    %v430 = vpack.c.b16 %v370, %v368
    %v431 = vpack.c.b16 %v373, %v371
    %v432 = vpack.c.b16 %v374, %v372
    %v433 = vpack.c.b16 %v377, %v375
    %v434 = vpack.c.b16 %v378, %v376
    %v435 = vpack.c.b16 %v381, %v379
    %v436 = vpack.c.b16 %v382, %v380
    %v437 = vpack.c.b16 %v385, %v383
    %v438 = vpack.c.b16 %v386, %v384
    %v439 = vpack.c.b16 %v389, %v387
    %v440 = vpack.c.b16 %v390, %v388
    %v441 = vpack.c.b16 %v393, %v391
    %v442 = vpack.c.b16 %v394, %v392
    %v443 = vpack.c.b16 %v397, %v395
    %v444 = vpack.c.b16 %v398, %v396
    %v445 = vpack.c.b16 %v401, %v399
    %v446 = vpack.c.b16 %v402, %v400
    %v447 = vpack.c.b16 %v405, %v403
    %v448 = vpack.c.b16 %v406, %v404
    %v449 = vpack.c.b16 %v409, %v407
    %v450 = vpack.c.b16 %v410, %v408
    %v451 = vpack.c.b16 %v413, %v411
    %v452 = vpack.c.b16 %v414, %v412
    %v453 = vpack.c.b16 %v417, %v415
    %v454 = vpack.c.b16 %v418, %v416
    %v455 = vpack.c.b16 %v421, %v419
    %v456 = vpack.c.b16 %v422, %v420
    %v457 = vpack.c.b16 %v425, %v423
    %v458 = vpack.c.b16 %v426, %v424
    %491 = vmatprep.subr.bf16.mxu0 %v428
    %492 = vmatpush1.bf16.msra.mxu0 %v427
    %493 = vmatprep.subr.bf16.mxu0 %v430
    %494 = vmatpush1.bf16.msra.mxu0 %v429
    %495 = vmatprep.subr.bf16.mxu0 %v432
    %496 = vmatpush1.bf16.msra.mxu0 %v431
    %497 = vmatprep.subr.bf16.mxu0 %v434
    %498 = vmatpush1.bf16.msra.mxu0 %v433
    %499 = vmatprep.subr.bf16.mxu0 %v436
    %500 = vmatpush1.bf16.msra.mxu0 %v435
    %501 = vmatprep.subr.bf16.mxu0 %v438
    %502 = vmatpush1.bf16.msra.mxu0 %v437
    %503 = vmatprep.subr.bf16.mxu0 %v440
    %504 = vmatpush1.bf16.msra.mxu0 %v439
    %505 = vmatprep.subr.bf16.mxu0 %v442
    %506 = vmatpush1.bf16.msra.mxu0 %v441
    %507 = vmatprep.subr.bf16.mxu0 %v444
    %508 = vmatpush1.bf16.msra.mxu0 %v443
    %509 = vmatprep.subr.bf16.mxu0 %v446
    %510 = vmatpush1.bf16.msra.mxu0 %v445
    %511 = vmatprep.subr.bf16.mxu0 %v448
    %512 = vmatpush1.bf16.msra.mxu0 %v447
    %513 = vmatprep.subr.bf16.mxu0 %v450
    %514 = vmatpush1.bf16.msra.mxu0 %v449
    %515 = vmatprep.subr.bf16.mxu0 %v452
    %516 = vmatpush1.bf16.msra.mxu0 %v451
    %517 = vmatprep.subr.bf16.mxu0 %v454
    %518 = vmatpush1.bf16.msra.mxu0 %v453
    %519 = vmatprep.subr.bf16.mxu0 %v456
    %520 = vmatpush1.bf16.msra.mxu0 %v455
    %521 = vmatprep.subr.bf16.mxu0 %v458
    %522 = vmatpush1.bf16.msra.mxu0 %v457
    %523 = vmatprep.mubr.bf16.mxu0 %v330
    %524 = vmatmul.mubr.bf16.gmra.mrb[0].mxu0 %v329
    %v525 = vpop.f32.mrb[0].mxu0
    %v526 = vadd.f32 0.0, %v525
    %v527 = vpop.f32.mrb[0].mxu0
    %v528 = vadd.f32 0.0, %v527
    %v529 = vpop.f32.mrb[0].mxu0
    %v530 = vpop.f32.mrb[0].mxu0
    %531 = vdwg.mxu0
    %v532 = vadd.f32 %v315, %v526
    %v533 = vadd.f32 %v317, %v528
    %v534 = vadd.f32 %v532, %v323
    %v535 = vadd.f32 %v533, %v324
    %v536 = vmax.f32 %v534, -0.0001
    %v537 = vmax.f32 %v535, -0.0001
    %v538 = vmin.f32 %v536, 0.0001
    %v539 = vmin.f32 %v537, 0.0001
    %v540 = vsub.f32 %v534, %v538
    %v541 = vsub.f32 %v535, %v539
    %v542 = vadd.f32 %v323, %v538
    %v543 = vadd.f32 %v324, %v539
    %v544 = vsub.f32 %v540, %v542
    %v545 = vsub.f32 %v541, %v543
    %v546 = vpack.c.bf16 %v544, %v544
    %v547 = vpack.c.bf16 %v545, %v545
    %548 = vmatprep.subr.bf16.mxu0 %v428
    %549 = vmatpush1.bf16.msra.mxu0 %v427
    %550 = vmatprep.subr.bf16.mxu0 %v430
    %551 = vmatpush1.bf16.msra.mxu0 %v429
    %552 = vmatprep.subr.bf16.mxu0 %v432
    %553 = vmatpush1.bf16.msra.mxu0 %v431
    %554 = vmatprep.subr.bf16.mxu0 %v434
    %555 = vmatpush1.bf16.msra.mxu0 %v433
    %556 = vmatprep.subr.bf16.mxu0 %v436
    %557 = vmatpush1.bf16.msra.mxu0 %v435
    %558 = vmatprep.subr.bf16.mxu0 %v438
    %559 = vmatpush1.bf16.msra.mxu0 %v437
    %560 = vmatprep.subr.bf16.mxu0 %v440
    %561 = vmatpush1.bf16.msra.mxu0 %v439
    %562 = vmatprep.subr.bf16.mxu0 %v442
    %563 = vmatpush1.bf16.msra.mxu0 %v441
    %564 = vmatprep.subr.bf16.mxu0 %v444
    %565 = vmatpush1.bf16.msra.mxu0 %v443
    %566 = vmatprep.subr.bf16.mxu0 %v446
    %567 = vmatpush1.bf16.msra.mxu0 %v445
    %568 = vmatprep.subr.bf16.mxu0 %v448
    %569 = vmatpush1.bf16.msra.mxu0 %v447
    %570 = vmatprep.subr.bf16.mxu0 %v450
    %571 = vmatpush1.bf16.msra.mxu0 %v449
    %572 = vmatprep.subr.bf16.mxu0 %v452
    %573 = vmatpush1.bf16.msra.mxu0 %v451
    %574 = vmatprep.subr.bf16.mxu0 %v454
    %575 = vmatpush1.bf16.msra.mxu0 %v453
    %576 = vmatprep.subr.bf16.mxu0 %v456
    %577 = vmatpush1.bf16.msra.mxu0 %v455
    %578 = vmatprep.subr.bf16.mxu0 %v458
    %579 = vmatpush1.bf16.msra.mxu0 %v457
    %580 = vmatprep.mubr.bf16.mxu0 %v547
    %581 = vmatmul.mubr.bf16.gmra.mrb[0].mxu0 %v546
    %v582 = vpop.f32.mrb[0].mxu0
    %v583 = vadd.f32 0.0, %v582
    %v584 = vpop.f32.mrb[0].mxu0
    %v585 = vadd.f32 0.0, %v584
    %v586 = vpop.f32.mrb[0].mxu0
    %v587 = vpop.f32.mrb[0].mxu0
    %588 = vdwg.mxu0
    %v589 = vadd.f32 %v315, %v583
    %v590 = vadd.f32 %v317, %v585
    %v591 = vadd.f32 %v589, %v542
    %v592 = vadd.f32 %v590, %v543
    %v593 = vmax.f32 %v591, -0.0001
    %v594 = vmax.f32 %v592, -0.0001
    %v595 = vmin.f32 %v593, 0.0001
    %v596 = vmin.f32 %v594, 0.0001
    %v597 = vsub.f32 %v591, %v595
    %v598 = vsub.f32 %v592, %v596
    %v599 = vadd.f32 %v542, %v595
    %v600 = vadd.f32 %v543, %v596
    %v601 = vsub.f32 %v597, %v599
    %v602 = vsub.f32 %v598, %v600
    %v603 = vpack.c.bf16 %v601, %v601
    %v604 = vpack.c.bf16 %v602, %v602
    %605 = vmatprep.subr.bf16.mxu0 %v428
    %606 = vmatpush1.bf16.msra.mxu0 %v427
    %607 = vmatprep.subr.bf16.mxu0 %v430
    %608 = vmatpush1.bf16.msra.mxu0 %v429
    %609 = vmatprep.subr.bf16.mxu0 %v432
    %610 = vmatpush1.bf16.msra.mxu0 %v431
    %611 = vmatprep.subr.bf16.mxu0 %v434
    %612 = vmatpush1.bf16.msra.mxu0 %v433
    %613 = vmatprep.subr.bf16.mxu0 %v436
    %614 = vmatpush1.bf16.msra.mxu0 %v435
    %615 = vmatprep.subr.bf16.mxu0 %v438
    %616 = vmatpush1.bf16.msra.mxu0 %v437
    %617 = vmatprep.subr.bf16.mxu0 %v440
    %618 = vmatpush1.bf16.msra.mxu0 %v439
    %619 = vmatprep.subr.bf16.mxu0 %v442
    %620 = vmatpush1.bf16.msra.mxu0 %v441
    %621 = vmatprep.subr.bf16.mxu0 %v444
    %622 = vmatpush1.bf16.msra.mxu0 %v443
    %623 = vmatprep.subr.bf16.mxu0 %v446
    %624 = vmatpush1.bf16.msra.mxu0 %v445
    %625 = vmatprep.subr.bf16.mxu0 %v448
    %626 = vmatpush1.bf16.msra.mxu0 %v447
    %627 = vmatprep.subr.bf16.mxu0 %v450
    %628 = vmatpush1.bf16.msra.mxu0 %v449
    %629 = vmatprep.subr.bf16.mxu0 %v452
    %630 = vmatpush1.bf16.msra.mxu0 %v451
    %631 = vmatprep.subr.bf16.mxu0 %v454
    %632 = vmatpush1.bf16.msra.mxu0 %v453
    %633 = vmatprep.subr.bf16.mxu0 %v456
    %634 = vmatpush1.bf16.msra.mxu0 %v455
    %635 = vmatprep.subr.bf16.mxu0 %v458
    %636 = vmatpush1.bf16.msra.mxu0 %v457
    %637 = vmatprep.mubr.bf16.mxu0 %v604
    %638 = vmatmul.mubr.bf16.gmra.mrb[0].mxu0 %v603
    %v639 = vpop.f32.mrb[0].mxu0
    %v640 = vadd.f32 0.0, %v639
    %v641 = vpop.f32.mrb[0].mxu0
    %v642 = vadd.f32 0.0, %v641
    %v643 = vpop.f32.mrb[0].mxu0
    %v644 = vpop.f32.mrb[0].mxu0
    %645 = vdwg.mxu0
    %v646 = vadd.f32 %v315, %v640
    %v647 = vadd.f32 %v317, %v642
    %v648 = vadd.f32 %v646, %v599
    %v649 = vadd.f32 %v647, %v600
    %v650 = vmax.f32 %v648, -0.0001
    %v651 = vmax.f32 %v649, -0.0001
    %v652 = vmin.f32 %v650, 0.0001
    %v653 = vmin.f32 %v651, 0.0001
    %v654 = vsub.f32 %v648, %v652
    %v655 = vsub.f32 %v649, %v653
    %v656 = vadd.f32 %v599, %v652
    %v657 = vadd.f32 %v600, %v653
    %v658 = vsub.f32 %v654, %v656
    %v659 = vsub.f32 %v655, %v657
    %v660 = vpack.c.bf16 %v658, %v658
    %v661 = vpack.c.bf16 %v659, %v659
    %v694 = vunpack.c.l.b16 %v135
    %v695 = vunpack.c.l.b16 %v136
    %v696 = vunpack.c.l.b16 %v137
    %v697 = vunpack.c.l.b16 %v138
    %v698 = vunpack.c.l.b16 %v139
    %v699 = vunpack.c.l.b16 %v140
    %v700 = vunpack.c.l.b16 %v141
    %v701 = vunpack.c.l.b16 %v142
    %v702 = vunpack.c.l.b16 %v143
    %v703 = vunpack.c.l.b16 %v144
    %v704 = vunpack.c.l.b16 %v145
    %v705 = vunpack.c.l.b16 %v146
    %v706 = vunpack.c.l.b16 %v147
    %v707 = vunpack.c.l.b16 %v148
    %v708 = vunpack.c.l.b16 %v149
    %v709 = vunpack.c.l.b16 %v150
    %v710 = vunpack.c.l.b16 %v151
    %v711 = vunpack.c.l.b16 %v152
    %v712 = vunpack.c.l.b16 %v153
    %v713 = vunpack.c.l.b16 %v154
    %v714 = vunpack.c.l.b16 %v155
    %v715 = vunpack.c.l.b16 %v156
    %v716 = vunpack.c.l.b16 %v157
    %v717 = vunpack.c.l.b16 %v158
    %v718 = vunpack.c.l.b16 %v159
    %v719 = vunpack.c.l.b16 %v160
    %v720 = vunpack.c.l.b16 %v161
    %v721 = vunpack.c.l.b16 %v162
    %v722 = vunpack.c.l.b16 %v163
    %v723 = vunpack.c.l.b16 %v164
    %v724 = vunpack.c.l.b16 %v165
    %v725 = vunpack.c.l.b16 %v166
    %v726 = vpack.c.b16 %v695, %v694
    %v727 = vpack.c.b16 %v697, %v696
    %v728 = vpack.c.b16 %v699, %v698
    %v729 = vpack.c.b16 %v701, %v700
    %v730 = vpack.c.b16 %v703, %v702
    %v731 = vpack.c.b16 %v705, %v704
    %v732 = vpack.c.b16 %v707, %v706
    %v733 = vpack.c.b16 %v709, %v708
    %v734 = vpack.c.b16 %v711, %v710
    %v735 = vpack.c.b16 %v713, %v712
    %v736 = vpack.c.b16 %v715, %v714
    %v737 = vpack.c.b16 %v717, %v716
    %v738 = vpack.c.b16 %v719, %v718
    %v739 = vpack.c.b16 %v721, %v720
    %v740 = vpack.c.b16 %v723, %v722
    %v741 = vpack.c.b16 %v725, %v724
    %758 = vmatprep.subr.bf16.mxu0 0
    %759 = vmatpush1.bf16.msra.mxu0 %v726
    %760 = vmatprep.subr.bf16.mxu0 0
    %761 = vmatpush1.bf16.msra.mxu0 %v727
    %762 = vmatprep.subr.bf16.mxu0 0
    %763 = vmatpush1.bf16.msra.mxu0 %v728
    %764 = vmatprep.subr.bf16.mxu0 0
    %765 = vmatpush1.bf16.msra.mxu0 %v729
    %766 = vmatprep.subr.bf16.mxu0 0
    %767 = vmatpush1.bf16.msra.mxu0 %v730
    %768 = vmatprep.subr.bf16.mxu0 0
    %769 = vmatpush1.bf16.msra.mxu0 %v731
    %770 = vmatprep.subr.bf16.mxu0 0
    %771 = vmatpush1.bf16.msra.mxu0 %v732
    %772 = vmatprep.subr.bf16.mxu0 0
    %773 = vmatpush1.bf16.msra.mxu0 %v733
    %774 = vmatprep.subr.bf16.mxu0 0
    %775 = vmatpush1.bf16.msra.mxu0 %v734
    %776 = vmatprep.subr.bf16.mxu0 0
    %777 = vmatpush1.bf16.msra.mxu0 %v735
    %778 = vmatprep.subr.bf16.mxu0 0
    %779 = vmatpush1.bf16.msra.mxu0 %v736
    %780 = vmatprep.subr.bf16.mxu0 0
    %781 = vmatpush1.bf16.msra.mxu0 %v737
    %782 = vmatprep.subr.bf16.mxu0 0
    %783 = vmatpush1.bf16.msra.mxu0 %v738
    %784 = vmatprep.subr.bf16.mxu0 0
    %785 = vmatpush1.bf16.msra.mxu0 %v739
    %786 = vmatprep.subr.bf16.mxu0 0
    %787 = vmatpush1.bf16.msra.mxu0 %v740
    %788 = vmatprep.subr.bf16.mxu0 0
    %789 = vmatpush1.bf16.msra.mxu0 %v741
    %790 = vmatprep.mubr.bf16.mxu0 %v661
    %791 = vmatmul.mubr.bf16.gmra.mrb[0].mxu0 %v660
    %v792 = vpop.f32.mrb[0].mxu0
    %v793 = vadd.f32 0.0, %v792
    %v794 = vpop.f32.mrb[0].mxu0
    %v795 = vpop.f32.mrb[0].mxu0
    %v796 = vpop.f32.mrb[0].mxu0
    %797 = vdwg.mxu0
    %v814 = vunpack.c.l.b16 %v103
    %v815 = vunpack.c.l.b16 %v104
    %v816 = vunpack.c.l.b16 %v105
    %v817 = vunpack.c.l.b16 %v106
    %v818 = vunpack.c.l.b16 %v107
    %v819 = vunpack.c.l.b16 %v108
    %v820 = vunpack.c.l.b16 %v109
    %v821 = vunpack.c.l.b16 %v110
    %v822 = vunpack.c.l.b16 %v111
    %v823 = vunpack.c.l.b16 %v112
    %v824 = vunpack.c.l.b16 %v113
    %v825 = vunpack.c.l.b16 %v114
    %v826 = vunpack.c.l.b16 %v115
    %v827 = vunpack.c.l.b16 %v116
    %v828 = vunpack.c.l.b16 %v117
    %v829 = vunpack.c.l.b16 %v118
    %v830 = vpack.c.b16 %v815, %v814
    %v831 = vpack.c.b16 %v817, %v816
    %v832 = vpack.c.b16 %v819, %v818
    %v833 = vpack.c.b16 %v821, %v820
    %v834 = vpack.c.b16 %v823, %v822
    %v835 = vpack.c.b16 %v825, %v824
    %v836 = vpack.c.b16 %v827, %v826
    %v837 = vpack.c.b16 %v829, %v828
    %846 = vmatprep.subr.bf16.mxu0 0
    %847 = vmatpush1.bf16.msra.mxu0 %v830
    %848 = vmatprep.subr.bf16.mxu0 0
    %849 = vmatpush1.bf16.msra.mxu0 %v831
    %850 = vmatprep.subr.bf16.mxu0 0
    %851 = vmatpush1.bf16.msra.mxu0 %v832
    %852 = vmatprep.subr.bf16.mxu0 0
    %853 = vmatpush1.bf16.msra.mxu0 %v833
    %854 = vmatprep.subr.bf16.mxu0 0
    %855 = vmatpush1.bf16.msra.mxu0 %v834
    %856 = vmatprep.subr.bf16.mxu0 0
    %857 = vmatpush1.bf16.msra.mxu0 %v835
    %858 = vmatprep.subr.bf16.mxu0 0
    %859 = vmatpush1.bf16.msra.mxu0 %v836
    %860 = vmatprep.subr.bf16.mxu0 0
    %861 = vmatpush1.bf16.msra.mxu0 %v837
    %862 = vmatprep.subr.bf16.mxu0 0
    %863 = vmatpush1.bf16.msra.mxu0 0
    %864 = vmatprep.subr.bf16.mxu0 0
    %865 = vmatpush1.bf16.msra.mxu0 0
    %866 = vmatprep.subr.bf16.mxu0 0
    %867 = vmatpush1.bf16.msra.mxu0 0
    %868 = vmatprep.subr.bf16.mxu0 0
    %869 = vmatpush1.bf16.msra.mxu0 0
    %870 = vmatprep.subr.bf16.mxu0 0
    %871 = vmatpush1.bf16.msra.mxu0 0
    %872 = vmatprep.subr.bf16.mxu0 0
    %873 = vmatpush1.bf16.msra.mxu0 0
    %874 = vmatprep.subr.bf16.mxu0 0
    %875 = vmatpush1.bf16.msra.mxu0 0
    %876 = vmatprep.subr.bf16.mxu0 0
    %877 = vmatpush1.bf16.msra.mxu0 0
    %878 = vmatprep.mubr.bf16.mxu0 0
    %879 = vmatmul.mubr.bf16.gmra.mrb[0].mxu0 %v199
    %v880 = vpop.f32.mrb[0].mxu0
    %v881 = vadd.f32 %v793, %v880
    %v882 = vpop.f32.mrb[0].mxu0
    %v883 = vpop.f32.mrb[0].mxu0
    %v884 = vpop.f32.mrb[0].mxu0
    %885 = vdwg.mxu0
    %s886 = sld [smem:[#allocation2]]
    %s887 = sld [smem:[#allocation2 + $0x1]]
    %v888 = vstv %s886
    %v889 = vmax.f32 %v888, %v881
    %v890 = vstv %s887
    %v891 = vmin.f32 %v890, %v889
    %892 = vst [vmem:[#allocation13] sm:$0xff] %v891
    // Predicated region
    $region50: #{tpu_custom_call.1} parent=1 // pred_check
      _
    $region51: #{tpu_custom_call.1} parent=1 // pred_check_branch
      %894 = sbr.rel (0) target = $region53
    $region52: #{tpu_custom_call.1} parent=1 // pred_region
      %s896 = ssub.s32 128, 128
      %897 = vsyncadd [#allocation4], %s896
      %s899 = sshll.u32 [#allocation13], 4
      %s900 = int_to_ptr.vmem [resolvable:$true] %s899
      %902 = dma.vmem_to_hbm [thread:$0]  %s900, 128, %s6, [#allocation4]
    $region53: #{tpu_custom_call.1} parent=1 // pred_fallthru
      _
    // Predicated region
    $region54: #{tpu_custom_call.1} parent=1 // pred_check
      _
    $region55: #{tpu_custom_call.1} parent=1 // pred_check_branch
      %904 = sbr.rel (0) target = $region57
    $region56: #{tpu_custom_call.1} parent=1 // pred_region
      %905 = dma.done [#allocation4], 128
    $region57: #{tpu_custom_call.1} parent=1 // pred_fallthru
      _
    %906 = vsyncpa [#allocation3], 1
    %907 = vsyncpa [#allocation8], 1
    %908 = vsyncpa [#allocation11], 1
    %909 = vsyncpa [#allocation4], 1
    %910 = vsyncpa [#allocation5], 1

// kernel: tpu_custom_call.1
$region0: #{tpu_custom_call.1}
  #allocation0 [shape = 'u32[]', space=smem, size = 0x4, offset = 0x4, fixed_abs, tag = 'smem constant byte address 0x4 - core index']
  #allocation1 [shape = 'u32[144,128]{1,0:T(1,128)}', space=vmem, size = 0x12000, scoped, tag = 'internal scratch']
  %s0 = inlined_call_operand.hbm [shape: f32[2], index: 0, kind: input, shape index: {}]
  %s1 = inlined_call_operand.hbm [shape: f32[8,128], index: 1, kind: input, shape index: {}]
  %s2 = inlined_call_operand.hbm [shape: bf16[128,128], index: 2, kind: input, shape index: {}]
  %s3 = inlined_call_operand.hbm [shape: bf16[128,256], index: 3, kind: input, shape index: {}]
  %s4 = inlined_call_operand.hbm [shape: bf16[256,128], index: 4, kind: input, shape index: {}]
  %s5 = inlined_call_operand.hbm [shape: bf16[256,256], index: 5, kind: input, shape index: {}]
  %s6 = inlined_call_operand.hbm [shape: f32[8,128], index: 6, kind: output, shape index: {}]
  %s7 = sld [smem:[#allocation0]]
  $region58: #{tpu_custom_call.1} parent=0
    _
  %s9 = ssub.s32 1, %s7
  %s10 = scalar_select 0, %s9, %s7
  $region1: #{tpu_custom_call.1} parent=0
    #allocation2 [shape = 'u8[512]{0}', space=smem, size = 0x200, scoped, tag = 'input window, operand 0, single buffered']
    #allocation3 [shape = 's32[1]{0}', space=sflag, size = 0x4, scoped, tag = 'scoped memory for tpu_custom_call.1']
    #allocation4 [shape = 's32[1]{0}', space=sflag, size = 0x4, scoped, tag = 'scoped memory for tpu_custom_call.1']
    #allocation5 [shape = 's32[1]{0}', space=sflag, size = 0x4, scoped, tag = 'scoped memory for tpu_custom_call.1']
    #allocation6 [shape = 'u8[4096]{0}', space=vmem, size = 0x1000, scoped, tag = 'input window, operand 1, single buffered']
    #allocation7 [shape = 'u8[32768]{0}', space=vmem, size = 0x8000, scoped, tag = 'input window, operand 2, single buffered']
    #allocation8 [shape = 's32[1]{0}', space=sflag, size = 0x4, scoped, tag = 'scoped memory for tpu_custom_call.1']
    #allocation9 [shape = 'u8[65536]{0}', space=vmem, size = 0x10000, scoped, tag = 'input window, operand 3, single buffered']
    #allocation10 [shape = 'u8[65536]{0}', space=vmem, size = 0x10000, scoped, tag = 'input window, operand 4, single buffered']
    #allocation11 [shape = 's32[1]{0}', space=sflag, size = 0x4, scoped, tag = 'scoped memory for tpu_custom_call.1']
    #allocation12 [shape = 'u8[131072]{0}', space=vmem, size = 0x20000, scoped, tag = 'input window, operand 5, single buffered']
    #allocation13 [shape = 'u8[4096]{0}', space=vmem, size = 0x1000, scoped, tag = 'output window, operand 0, single buffered']
    %11 = vsyncpa [#allocation5], 0
    %12 = vsyncpa [#allocation3], 0
    %13 = vsyncpa [#allocation8], 0
    %14 = vsyncpa [#allocation11], 0
    %15 = vsyncpa [#allocation4], 0
    // Predicated region
    $region2: #{tpu_custom_call.1} parent=1 // pred_check
      _
    $region3: #{tpu_custom_call.1} parent=1 // pred_check_branch
      %17 = sbr.rel (0) target = $region5
    $region4: #{tpu_custom_call.1} parent=1 // pred_region
      %s19 = ssub.s32 16, 16
      %20 = vsyncadd [#allocation5], %s19
      %23 = dma.hbm_to_smem %s0, 16, [#allocation2], [#allocation5]
    $region5: #{tpu_custom_call.1} parent=1 // pred_fallthru
      _
    // Predicated region
    $region6: #{tpu_custom_call.1} parent=1 // pred_check
      _
    $region7: #{tpu_custom_call.1} parent=1 // pred_check_branch
      %25 = sbr.rel (0) target = $region9
    $region8: #{tpu_custom_call.1} parent=1 // pred_region
      %s27 = ssub.s32 128, 128
      %28 = vsyncadd [#allocation3], %s27
      %s30 = sshll.u32 [#allocation6], 4
      %s31 = int_to_ptr.vmem [resolvable:$true] %s30
      %33 = dma.hbm_to_vmem [thread:$0]  %s1, 128, %s31, [#allocation3]
    $region9: #{tpu_custom_call.1} parent=1 // pred_fallthru
      _
    // Predicated region
    $region10: #{tpu_custom_call.1} parent=1 // pred_check
      _
    $region11: #{tpu_custom_call.1} parent=1 // pred_check_branch
      %35 = sbr.rel (0) target = $region13
    $region12: #{tpu_custom_call.1} parent=1 // pred_region
      %s37 = ssub.s32 1024, 1024
      %38 = vsyncadd [#allocation8], %s37
      %s39 = sshll.u32 [#allocation7], 4
      %s40 = int_to_ptr.vmem [resolvable:$true] %s39
      %45 = dma.hbm_to_vmem [thread:$0]  %s2, 1024, %s40, [#allocation8], 64, 64, 4
    $region13: #{tpu_custom_call.1} parent=1 // pred_fallthru
      _
    // Predicated region
    $region14: #{tpu_custom_call.1} parent=1 // pred_check
      _
    $region15: #{tpu_custom_call.1} parent=1 // pred_check_branch
      %47 = sbr.rel (0) target = $region17
    $region16: #{tpu_custom_call.1} parent=1 // pred_region
      %s49 = ssub.s32 2048, 2048
      %50 = vsyncadd [#allocation8], %s49
      %s51 = sshll.u32 [#allocation9], 4
      %s52 = int_to_ptr.vmem [resolvable:$true] %s51
      %57 = dma.hbm_to_vmem [thread:$0]  %s3, 2048, %s52, [#allocation8], 128, 128, 8
    $region17: #{tpu_custom_call.1} parent=1 // pred_fallthru
      _
    // Predicated region
    $region18: #{tpu_custom_call.1} parent=1 // pred_check
      _
    $region19: #{tpu_custom_call.1} parent=1 // pred_check_branch
      %59 = sbr.rel (0) target = $region21
    $region20: #{tpu_custom_call.1} parent=1 // pred_region
      %s61 = ssub.s32 2048, 2048
      %62 = vsyncadd [#allocation11], %s61
      %s63 = sshll.u32 [#allocation10], 4
      %s64 = int_to_ptr.vmem [resolvable:$true] %s63
      %69 = dma.hbm_to_vmem [thread:$0]  %s4, 2048, %s64, [#allocation11], 64, 64, 4
    $region21: #{tpu_custom_call.1} parent=1 // pred_fallthru
      _
    // Predicated region
    $region22: #{tpu_custom_call.1} parent=1 // pred_check
      _
    $region23: #{tpu_custom_call.1} parent=1 // pred_check_branch
      %71 = sbr.rel (0) target = $region25
    $region24: #{tpu_custom_call.1} parent=1 // pred_region
      %s73 = ssub.s32 4096, 4096
      %74 = vsyncadd [#allocation11], %s73
      %s75 = sshll.u32 [#allocation12], 4
      %s76 = int_to_ptr.vmem [resolvable:$true] %s75
      %81 = dma.hbm_to_vmem [thread:$0]  %s5, 4096, %s76, [#allocation11], 128, 128, 8
    $region25: #{tpu_custom_call.1} parent=1 // pred_fallthru
      _
    // Predicated region
    $region26: #{tpu_custom_call.1} parent=1 // pred_check
      _
    $region27: #{tpu_custom_call.1} parent=1 // pred_check_branch
      %83 = sbr.rel (0) target = $region29
    $region28: #{tpu_custom_call.1} parent=1 // pred_region
      %84 = dma.done [#allocation5], 16
    $region29: #{tpu_custom_call.1} parent=1 // pred_fallthru
      _
    // Predicated region
    $region30: #{tpu_custom_call.1} parent=1 // pred_check
      _
    $region31: #{tpu_custom_call.1} parent=1 // pred_check_branch
      %86 = sbr.rel (0) target = $region33
    $region32: #{tpu_custom_call.1} parent=1 // pred_region
      %87 = dma.done [#allocation3], 128
    $region33: #{tpu_custom_call.1} parent=1 // pred_fallthru
      _
    // Predicated region
    $region34: #{tpu_custom_call.1} parent=1 // pred_check
      _
    $region35: #{tpu_custom_call.1} parent=1 // pred_check_branch
      %89 = sbr.rel (0) target = $region37
    $region36: #{tpu_custom_call.1} parent=1 // pred_region
      %90 = dma.done [#allocation8], 1024
    $region37: #{tpu_custom_call.1} parent=1 // pred_fallthru
      _
    // Predicated region
    $region38: #{tpu_custom_call.1} parent=1 // pred_check
      _
    $region39: #{tpu_custom_call.1} parent=1 // pred_check_branch
      %92 = sbr.rel (0) target = $region41
    $region40: #{tpu_custom_call.1} parent=1 // pred_region
      %93 = dma.done [#allocation8], 2048
    $region41: #{tpu_custom_call.1} parent=1 // pred_fallthru
      _
    // Predicated region
    $region42: #{tpu_custom_call.1} parent=1 // pred_check
      _
    $region43: #{tpu_custom_call.1} parent=1 // pred_check_branch
      %95 = sbr.rel (0) target = $region45
    $region44: #{tpu_custom_call.1} parent=1 // pred_region
      %96 = dma.done [#allocation11], 2048
    $region45: #{tpu_custom_call.1} parent=1 // pred_fallthru
      _
    // Predicated region
    $region46: #{tpu_custom_call.1} parent=1 // pred_check
      _
    $region47: #{tpu_custom_call.1} parent=1 // pred_check_branch
      %98 = sbr.rel (0) target = $region49
    $region48: #{tpu_custom_call.1} parent=1 // pred_region
      %99 = dma.done [#allocation11], 4096
    $region49: #{tpu_custom_call.1} parent=1 // pred_fallthru
      _
    %100 = sfence
    %v102 = vld [vmem:[#allocation6] sm:$0xff]
    %v103 = vld [vmem:[#allocation7] sm:$0xf]
    %v104 = vld [vmem:[#allocation7 + $0x4] sm:$0xf]
    %v105 = vld [vmem:[#allocation7 + $0x8] sm:$0xf]
    %v106 = vld [vmem:[#allocation7 + $0xc] sm:$0xf]
    %v107 = vld [vmem:[#allocation7 + $0x10] sm:$0xf]
    %v108 = vld [vmem:[#allocation7 + $0x14] sm:$0xf]
    %v109 = vld [vmem:[#allocation7 + $0x18] sm:$0xf]
    %v110 = vld [vmem:[#allocation7 + $0x1c] sm:$0xf]
    %v111 = vld [vmem:[#allocation7 + $0x20] sm:$0xf]
    %v112 = vld [vmem:[#allocation7 + $0x24] sm:$0xf]
    %v113 = vld [vmem:[#allocation7 + $0x28] sm:$0xf]
    %v114 = vld [vmem:[#allocation7 + $0x2c] sm:$0xf]
    %v115 = vld [vmem:[#allocation7 + $0x30] sm:$0xf]
    %v116 = vld [vmem:[#allocation7 + $0x34] sm:$0xf]
    %v117 = vld [vmem:[#allocation7 + $0x38] sm:$0xf]
    %v118 = vld [vmem:[#allocation7 + $0x3c] sm:$0xf]
    %v119 = vld [vmem:[#allocation9] sm:$0xff]
    %v120 = vld [vmem:[#allocation9 + $0x8] sm:$0xff]
    %v121 = vld [vmem:[#allocation9 + $0x10] sm:$0xff]
    %v122 = vld [vmem:[#allocation9 + $0x18] sm:$0xff]
    %v123 = vld [vmem:[#allocation9 + $0x20] sm:$0xff]
    %v124 = vld [vmem:[#allocation9 + $0x28] sm:$0xff]
    %v125 = vld [vmem:[#allocation9 + $0x30] sm:$0xff]
    %v126 = vld [vmem:[#allocation9 + $0x38] sm:$0xff]
    %v127 = vld [vmem:[#allocation9 + $0x40] sm:$0xff]
    %v128 = vld [vmem:[#allocation9 + $0x48] sm:$0xff]
    %v129 = vld [vmem:[#allocation9 + $0x50] sm:$0xff]
    %v130 = vld [vmem:[#allocation9 + $0x58] sm:$0xff]
    %v131 = vld [vmem:[#allocation9 + $0x60] sm:$0xff]
    %v132 = vld [vmem:[#allocation9 + $0x68] sm:$0xff]
    %v133 = vld [vmem:[#allocation9 + $0x70] sm:$0xff]
    %v134 = vld [vmem:[#allocation9 + $0x78] sm:$0xff]
    %v135 = vld [vmem:[#allocation10] sm:$0xf]
    %v136 = vld [vmem:[#allocation10 + $0x4] sm:$0xf]
    %v137 = vld [vmem:[#allocation10 + $0x8] sm:$0xf]
    %v138 = vld [vmem:[#allocation10 + $0xc] sm:$0xf]
    %v139 = vld [vmem:[#allocation10 + $0x10] sm:$0xf]
    %v140 = vld [vmem:[#allocation10 + $0x14] sm:$0xf]
    %v141 = vld [vmem:[#allocation10 + $0x18] sm:$0xf]
    %v142 = vld [vmem:[#allocation10 + $0x1c] sm:$0xf]
    %v143 = vld [vmem:[#allocation10 + $0x20] sm:$0xf]
    %v144 = vld [vmem:[#allocation10 + $0x24] sm:$0xf]
    %v145 = vld [vmem:[#allocation10 + $0x28] sm:$0xf]
    %v146 = vld [vmem:[#allocation10 + $0x2c] sm:$0xf]
    %v147 = vld [vmem:[#allocation10 + $0x30] sm:$0xf]
    %v148 = vld [vmem:[#allocation10 + $0x34] sm:$0xf]
    %v149 = vld [vmem:[#allocation10 + $0x38] sm:$0xf]
    %v150 = vld [vmem:[#allocation10 + $0x3c] sm:$0xf]
    %v151 = vld [vmem:[#allocation10 + $0x40] sm:$0xf]
    %v152 = vld [vmem:[#allocation10 + $0x44] sm:$0xf]
    %v153 = vld [vmem:[#allocation10 + $0x48] sm:$0xf]
    %v154 = vld [vmem:[#allocation10 + $0x4c] sm:$0xf]
    %v155 = vld [vmem:[#allocation10 + $0x50] sm:$0xf]
    %v156 = vld [vmem:[#allocation10 + $0x54] sm:$0xf]
    %v157 = vld [vmem:[#allocation10 + $0x58] sm:$0xf]
    %v158 = vld [vmem:[#allocation10 + $0x5c] sm:$0xf]
    %v159 = vld [vmem:[#allocation10 + $0x60] sm:$0xf]
    %v160 = vld [vmem:[#allocation10 + $0x64] sm:$0xf]
    %v161 = vld [vmem:[#allocation10 + $0x68] sm:$0xf]
    %v162 = vld [vmem:[#allocation10 + $0x6c] sm:$0xf]
    %v163 = vld [vmem:[#allocation10 + $0x70] sm:$0xf]
    %v164 = vld [vmem:[#allocation10 + $0x74] sm:$0xf]
    %v165 = vld [vmem:[#allocation10 + $0x78] sm:$0xf]
    %v166 = vld [vmem:[#allocation10 + $0x7c] sm:$0xf]
    %v167 = vld [vmem:[#allocation12] sm:$0xff]
    %v168 = vld [vmem:[#allocation12 + $0x8] sm:$0xff]
    %v169 = vld [vmem:[#allocation12 + $0x10] sm:$0xff]
    %v170 = vld [vmem:[#allocation12 + $0x18] sm:$0xff]
    %v171 = vld [vmem:[#allocation12 + $0x20] sm:$0xff]
    %v172 = vld [vmem:[#allocation12 + $0x28] sm:$0xff]
    %v173 = vld [vmem:[#allocation12 + $0x30] sm:$0xff]
    %v174 = vld [vmem:[#allocation12 + $0x38] sm:$0xff]
    %v175 = vld [vmem:[#allocation12 + $0x40] sm:$0xff]
    %v176 = vld [vmem:[#allocation12 + $0x48] sm:$0xff]
    %v177 = vld [vmem:[#allocation12 + $0x50] sm:$0xff]
    %v178 = vld [vmem:[#allocation12 + $0x58] sm:$0xff]
    %v179 = vld [vmem:[#allocation12 + $0x60] sm:$0xff]
    %v180 = vld [vmem:[#allocation12 + $0x68] sm:$0xff]
    %v181 = vld [vmem:[#allocation12 + $0x70] sm:$0xff]
    %v182 = vld [vmem:[#allocation12 + $0x78] sm:$0xff]
    %v183 = vld [vmem:[#allocation12 + $0x80] sm:$0xff]
    %v184 = vld [vmem:[#allocation12 + $0x88] sm:$0xff]
    %v185 = vld [vmem:[#allocation12 + $0x90] sm:$0xff]
    %v186 = vld [vmem:[#allocation12 + $0x98] sm:$0xff]
    %v187 = vld [vmem:[#allocation12 + $0xa0] sm:$0xff]
    %v188 = vld [vmem:[#allocation12 + $0xa8] sm:$0xff]
    %v189 = vld [vmem:[#allocation12 + $0xb0] sm:$0xff]
    %v190 = vld [vmem:[#allocation12 + $0xb8] sm:$0xff]
    %v191 = vld [vmem:[#allocation12 + $0xc0] sm:$0xff]
    %v192 = vld [vmem:[#allocation12 + $0xc8] sm:$0xff]
    %v193 = vld [vmem:[#allocation12 + $0xd0] sm:$0xff]
    %v194 = vld [vmem:[#allocation12 + $0xd8] sm:$0xff]
    %v195 = vld [vmem:[#allocation12 + $0xe0] sm:$0xff]
    %v196 = vld [vmem:[#allocation12 + $0xe8] sm:$0xff]
    %v197 = vld [vmem:[#allocation12 + $0xf0] sm:$0xff]
    %v198 = vld [vmem:[#allocation12 + $0xf8] sm:$0xff]
    %v199 = vpack.c.bf16 %v102, %v102
    %v216 = vunpack.c.l.b16 %v119
    %v217 = vunpack.c.h.b16 %v119
    %v218 = vunpack.c.l.b16 %v120
    %v219 = vunpack.c.h.b16 %v120
    %v220 = vunpack.c.l.b16 %v121
    %v221 = vunpack.c.h.b16 %v121
    %v222 = vunpack.c.l.b16 %v122
    %v223 = vunpack.c.h.b16 %v122
    %v224 = vunpack.c.l.b16 %v123
    %v225 = vunpack.c.h.b16 %v123
    %v226 = vunpack.c.l.b16 %v124
    %v227 = vunpack.c.h.b16 %v124
    %v228 = vunpack.c.l.b16 %v125
    %v229 = vunpack.c.h.b16 %v125
    %v230 = vunpack.c.l.b16 %v126
    %v231 = vunpack.c.h.b16 %v126
    %v232 = vunpack.c.l.b16 %v127
    %v233 = vunpack.c.h.b16 %v127
    %v234 = vunpack.c.l.b16 %v128
    %v235 = vunpack.c.h.b16 %v128
    %v236 = vunpack.c.l.b16 %v129
    %v237 = vunpack.c.h.b16 %v129
    %v238 = vunpack.c.l.b16 %v130
    %v239 = vunpack.c.h.b16 %v130
    %v240 = vunpack.c.l.b16 %v131
    %v241 = vunpack.c.h.b16 %v131
    %v242 = vunpack.c.l.b16 %v132
    %v243 = vunpack.c.h.b16 %v132
    %v244 = vunpack.c.l.b16 %v133
    %v245 = vunpack.c.h.b16 %v133
    %v246 = vunpack.c.l.b16 %v134
    %v247 = vunpack.c.h.b16 %v134
    %v248 = vpack.c.b16 %v218, %v216
    %v249 = vpack.c.b16 %v219, %v217
    %v250 = vpack.c.b16 %v222, %v220
    %v251 = vpack.c.b16 %v223, %v221
    %v252 = vpack.c.b16 %v226, %v224
    %v253 = vpack.c.b16 %v227, %v225
    %v254 = vpack.c.b16 %v230, %v228
    %v255 = vpack.c.b16 %v231, %v229
    %v256 = vpack.c.b16 %v234, %v232
    %v257 = vpack.c.b16 %v235, %v233
    %v258 = vpack.c.b16 %v238, %v236
    %v259 = vpack.c.b16 %v239, %v237
    %v260 = vpack.c.b16 %v242, %v240
    %v261 = vpack.c.b16 %v243, %v241
    %v262 = vpack.c.b16 %v246, %v244
    %v263 = vpack.c.b16 %v247, %v245
    %280 = vmatprep.subr.bf16.mxu0 %v249
    %281 = vmatpush1.bf16.msra.mxu0 %v248
    %282 = vmatprep.subr.bf16.mxu0 %v251
    %283 = vmatpush1.bf16.msra.mxu0 %v250
    %284 = vmatprep.subr.bf16.mxu0 %v253
    %285 = vmatpush1.bf16.msra.mxu0 %v252
    %286 = vmatprep.subr.bf16.mxu0 %v255
    %287 = vmatpush1.bf16.msra.mxu0 %v254
    %288 = vmatprep.subr.bf16.mxu0 %v257
    %289 = vmatpush1.bf16.msra.mxu0 %v256
    %290 = vmatprep.subr.bf16.mxu0 %v259
    %291 = vmatpush1.bf16.msra.mxu0 %v258
    %292 = vmatprep.subr.bf16.mxu0 %v261
    %293 = vmatpush1.bf16.msra.mxu0 %v260
    %294 = vmatprep.subr.bf16.mxu0 %v263
    %295 = vmatpush1.bf16.msra.mxu0 %v262
    %296 = vmatprep.subr.bf16.mxu0 0
    %297 = vmatpush1.bf16.msra.mxu0 0
    %298 = vmatprep.subr.bf16.mxu0 0
    %299 = vmatpush1.bf16.msra.mxu0 0
    %300 = vmatprep.subr.bf16.mxu0 0
    %301 = vmatpush1.bf16.msra.mxu0 0
    %302 = vmatprep.subr.bf16.mxu0 0
    %303 = vmatpush1.bf16.msra.mxu0 0
    %304 = vmatprep.subr.bf16.mxu0 0
    %305 = vmatpush1.bf16.msra.mxu0 0
    %306 = vmatprep.subr.bf16.mxu0 0
    %307 = vmatpush1.bf16.msra.mxu0 0
    %308 = vmatprep.subr.bf16.mxu0 0
    %309 = vmatpush1.bf16.msra.mxu0 0
    %310 = vmatprep.subr.bf16.mxu0 0
    %311 = vmatpush1.bf16.msra.mxu0 0
    %312 = vmatprep.mubr.bf16.mxu0 0
    %313 = vmatmul.mubr.bf16.gmra.mrb[0].mxu0 %v199
    %v314 = vpop.f32.mrb[0].mxu0
    %v315 = vadd.f32 0.0, %v314
    %v316 = vpop.f32.mrb[0].mxu0
    %v317 = vadd.f32 0.0, %v316
    %v318 = vpop.f32.mrb[0].mxu0
    %v319 = vpop.f32.mrb[0].mxu0
    %320 = vdwg.mxu0
    %v321 = vmax.f32 %v315, -0.0001
    %v322 = vmax.f32 %v317, -0.0001
    %v323 = vmin.f32 %v321, 0.0001
    %v324 = vmin.f32 %v322, 0.0001
    %v325 = vsub.f32 %v315, %v323
    %v326 = vsub.f32 %v317, %v324
    %v327 = vsub.f32 %v325, %v323
    %v328 = vsub.f32 %v326, %v324
    %v329 = vpack.c.bf16 %v327, %v327
    %v330 = vpack.c.bf16 %v328, %v328
    %v363 = vunpack.c.l.b16 %v167
    %v364 = vunpack.c.h.b16 %v167
    %v365 = vunpack.c.l.b16 %v168
    %v366 = vunpack.c.h.b16 %v168
    %v367 = vunpack.c.l.b16 %v169
    %v368 = vunpack.c.h.b16 %v169
    %v369 = vunpack.c.l.b16 %v170
    %v370 = vunpack.c.h.b16 %v170
    %v371 = vunpack.c.l.b16 %v171
    %v372 = vunpack.c.h.b16 %v171
    %v373 = vunpack.c.l.b16 %v172
    %v374 = vunpack.c.h.b16 %v172
    %v375 = vunpack.c.l.b16 %v173
    %v376 = vunpack.c.h.b16 %v173
    %v377 = vunpack.c.l.b16 %v174
    %v378 = vunpack.c.h.b16 %v174
    %v379 = vunpack.c.l.b16 %v175
    %v380 = vunpack.c.h.b16 %v175
    %v381 = vunpack.c.l.b16 %v176
    %v382 = vunpack.c.h.b16 %v176
    %v383 = vunpack.c.l.b16 %v177
    %v384 = vunpack.c.h.b16 %v177
    %v385 = vunpack.c.l.b16 %v178
    %v386 = vunpack.c.h.b16 %v178
    %v387 = vunpack.c.l.b16 %v179
    %v388 = vunpack.c.h.b16 %v179
    %v389 = vunpack.c.l.b16 %v180
    %v390 = vunpack.c.h.b16 %v180
    %v391 = vunpack.c.l.b16 %v181
    %v392 = vunpack.c.h.b16 %v181
    %v393 = vunpack.c.l.b16 %v182
    %v394 = vunpack.c.h.b16 %v182
    %v395 = vunpack.c.l.b16 %v183
    %v396 = vunpack.c.h.b16 %v183
    %v397 = vunpack.c.l.b16 %v184
    %v398 = vunpack.c.h.b16 %v184
    %v399 = vunpack.c.l.b16 %v185
    %v400 = vunpack.c.h.b16 %v185
    %v401 = vunpack.c.l.b16 %v186
    %v402 = vunpack.c.h.b16 %v186
    %v403 = vunpack.c.l.b16 %v187
    %v404 = vunpack.c.h.b16 %v187
    %v405 = vunpack.c.l.b16 %v188
    %v406 = vunpack.c.h.b16 %v188
    %v407 = vunpack.c.l.b16 %v189
    %v408 = vunpack.c.h.b16 %v189
    %v409 = vunpack.c.l.b16 %v190
    %v410 = vunpack.c.h.b16 %v190
    %v411 = vunpack.c.l.b16 %v191
    %v412 = vunpack.c.h.b16 %v191
    %v413 = vunpack.c.l.b16 %v192
    %v414 = vunpack.c.h.b16 %v192
    %v415 = vunpack.c.l.b16 %v193
    %v416 = vunpack.c.h.b16 %v193
    %v417 = vunpack.c.l.b16 %v194
    %v418 = vunpack.c.h.b16 %v194
    %v419 = vunpack.c.l.b16 %v195
    %v420 = vunpack.c.h.b16 %v195
    %v421 = vunpack.c.l.b16 %v196
    %v422 = vunpack.c.h.b16 %v196
    %v423 = vunpack.c.l.b16 %v197
    %v424 = vunpack.c.h.b16 %v197
    %v425 = vunpack.c.l.b16 %v198
    %v426 = vunpack.c.h.b16 %v198
    %v427 = vpack.c.b16 %v365, %v363
    %v428 = vpack.c.b16 %v366, %v364
    %v429 = vpack.c.b16 %v369, %v367
    %v430 = vpack.c.b16 %v370, %v368
    %v431 = vpack.c.b16 %v373, %v371
    %v432 = vpack.c.b16 %v374, %v372
    %v433 = vpack.c.b16 %v377, %v375
    %v434 = vpack.c.b16 %v378, %v376
    %v435 = vpack.c.b16 %v381, %v379
    %v436 = vpack.c.b16 %v382, %v380
    %v437 = vpack.c.b16 %v385, %v383
    %v438 = vpack.c.b16 %v386, %v384
    %v439 = vpack.c.b16 %v389, %v387
    %v440 = vpack.c.b16 %v390, %v388
    %v441 = vpack.c.b16 %v393, %v391
    %v442 = vpack.c.b16 %v394, %v392
    %v443 = vpack.c.b16 %v397, %v395
    %v444 = vpack.c.b16 %v398, %v396
    %v445 = vpack.c.b16 %v401, %v399
    %v446 = vpack.c.b16 %v402, %v400
    %v447 = vpack.c.b16 %v405, %v403
    %v448 = vpack.c.b16 %v406, %v404
    %v449 = vpack.c.b16 %v409, %v407
    %v450 = vpack.c.b16 %v410, %v408
    %v451 = vpack.c.b16 %v413, %v411
    %v452 = vpack.c.b16 %v414, %v412
    %v453 = vpack.c.b16 %v417, %v415
    %v454 = vpack.c.b16 %v418, %v416
    %v455 = vpack.c.b16 %v421, %v419
    %v456 = vpack.c.b16 %v422, %v420
    %v457 = vpack.c.b16 %v425, %v423
    %v458 = vpack.c.b16 %v426, %v424
    %491 = vmatprep.subr.bf16.mxu0 %v428
    %492 = vmatpush1.bf16.msra.mxu0 %v427
    %493 = vmatprep.subr.bf16.mxu0 %v430
    %494 = vmatpush1.bf16.msra.mxu0 %v429
    %495 = vmatprep.subr.bf16.mxu0 %v432
    %496 = vmatpush1.bf16.msra.mxu0 %v431
    %497 = vmatprep.subr.bf16.mxu0 %v434
    %498 = vmatpush1.bf16.msra.mxu0 %v433
    %499 = vmatprep.subr.bf16.mxu0 %v436
    %500 = vmatpush1.bf16.msra.mxu0 %v435
    %501 = vmatprep.subr.bf16.mxu0 %v438
    %502 = vmatpush1.bf16.msra.mxu0 %v437
    %503 = vmatprep.subr.bf16.mxu0 %v440
    %504 = vmatpush1.bf16.msra.mxu0 %v439
    %505 = vmatprep.subr.bf16.mxu0 %v442
    %506 = vmatpush1.bf16.msra.mxu0 %v441
    %507 = vmatprep.subr.bf16.mxu0 %v444
    %508 = vmatpush1.bf16.msra.mxu0 %v443
    %509 = vmatprep.subr.bf16.mxu0 %v446
    %510 = vmatpush1.bf16.msra.mxu0 %v445
    %511 = vmatprep.subr.bf16.mxu0 %v448
    %512 = vmatpush1.bf16.msra.mxu0 %v447
    %513 = vmatprep.subr.bf16.mxu0 %v450
    %514 = vmatpush1.bf16.msra.mxu0 %v449
    %515 = vmatprep.subr.bf16.mxu0 %v452
    %516 = vmatpush1.bf16.msra.mxu0 %v451
    %517 = vmatprep.subr.bf16.mxu0 %v454
    %518 = vmatpush1.bf16.msra.mxu0 %v453
    %519 = vmatprep.subr.bf16.mxu0 %v456
    %520 = vmatpush1.bf16.msra.mxu0 %v455
    %521 = vmatprep.subr.bf16.mxu0 %v458
    %522 = vmatpush1.bf16.msra.mxu0 %v457
    %523 = vmatprep.mubr.bf16.mxu0 %v330
    %524 = vmatmul.mubr.bf16.gmra.mrb[0].mxu0 %v329
    %v525 = vpop.f32.mrb[0].mxu0
    %v526 = vadd.f32 0.0, %v525
    %v527 = vpop.f32.mrb[0].mxu0
    %v528 = vadd.f32 0.0, %v527
    %v529 = vpop.f32.mrb[0].mxu0
    %v530 = vpop.f32.mrb[0].mxu0
    %531 = vdwg.mxu0
    %v532 = vadd.f32 %v315, %v526
    %v533 = vadd.f32 %v317, %v528
    %v534 = vadd.f32 %v532, %v323
    %v535 = vadd.f32 %v533, %v324
    %v536 = vmax.f32 %v534, -0.0001
    %v537 = vmax.f32 %v535, -0.0001
    %v538 = vmin.f32 %v536, 0.0001
    %v539 = vmin.f32 %v537, 0.0001
    %v540 = vsub.f32 %v534, %v538
    %v541 = vsub.f32 %v535, %v539
    %v542 = vadd.f32 %v323, %v538
    %v543 = vadd.f32 %v324, %v539
    %v544 = vsub.f32 %v540, %v542
    %v545 = vsub.f32 %v541, %v543
    %v546 = vpack.c.bf16 %v544, %v544
    %v547 = vpack.c.bf16 %v545, %v545
    %548 = vmatprep.subr.bf16.mxu0 %v428
    %549 = vmatpush1.bf16.msra.mxu0 %v427
    %550 = vmatprep.subr.bf16.mxu0 %v430
    %551 = vmatpush1.bf16.msra.mxu0 %v429
    %552 = vmatprep.subr.bf16.mxu0 %v432
    %553 = vmatpush1.bf16.msra.mxu0 %v431
    %554 = vmatprep.subr.bf16.mxu0 %v434
    %555 = vmatpush1.bf16.msra.mxu0 %v433
    %556 = vmatprep.subr.bf16.mxu0 %v436
    %557 = vmatpush1.bf16.msra.mxu0 %v435
    %558 = vmatprep.subr.bf16.mxu0 %v438
    %559 = vmatpush1.bf16.msra.mxu0 %v437
    %560 = vmatprep.subr.bf16.mxu0 %v440
    %561 = vmatpush1.bf16.msra.mxu0 %v439
    %562 = vmatprep.subr.bf16.mxu0 %v442
    %563 = vmatpush1.bf16.msra.mxu0 %v441
    %564 = vmatprep.subr.bf16.mxu0 %v444
    %565 = vmatpush1.bf16.msra.mxu0 %v443
    %566 = vmatprep.subr.bf16.mxu0 %v446
    %567 = vmatpush1.bf16.msra.mxu0 %v445
    %568 = vmatprep.subr.bf16.mxu0 %v448
    %569 = vmatpush1.bf16.msra.mxu0 %v447
    %570 = vmatprep.subr.bf16.mxu0 %v450
    %571 = vmatpush1.bf16.msra.mxu0 %v449
    %572 = vmatprep.subr.bf16.mxu0 %v452
    %573 = vmatpush1.bf16.msra.mxu0 %v451
    %574 = vmatprep.subr.bf16.mxu0 %v454
    %575 = vmatpush1.bf16.msra.mxu0 %v453
    %576 = vmatprep.subr.bf16.mxu0 %v456
    %577 = vmatpush1.bf16.msra.mxu0 %v455
    %578 = vmatprep.subr.bf16.mxu0 %v458
    %579 = vmatpush1.bf16.msra.mxu0 %v457
    %580 = vmatprep.mubr.bf16.mxu0 %v547
    %581 = vmatmul.mubr.bf16.gmra.mrb[0].mxu0 %v546
    %v582 = vpop.f32.mrb[0].mxu0
    %v583 = vadd.f32 0.0, %v582
    %v584 = vpop.f32.mrb[0].mxu0
    %v585 = vadd.f32 0.0, %v584
    %v586 = vpop.f32.mrb[0].mxu0
    %v587 = vpop.f32.mrb[0].mxu0
    %588 = vdwg.mxu0
    %v589 = vadd.f32 %v315, %v583
    %v590 = vadd.f32 %v317, %v585
    %v591 = vadd.f32 %v589, %v542
    %v592 = vadd.f32 %v590, %v543
    %v593 = vmax.f32 %v591, -0.0001
    %v594 = vmax.f32 %v592, -0.0001
    %v595 = vmin.f32 %v593, 0.0001
    %v596 = vmin.f32 %v594, 0.0001
    %v597 = vsub.f32 %v591, %v595
    %v598 = vsub.f32 %v592, %v596
    %v599 = vadd.f32 %v542, %v595
    %v600 = vadd.f32 %v543, %v596
    %v601 = vsub.f32 %v597, %v599
    %v602 = vsub.f32 %v598, %v600
    %v603 = vpack.c.bf16 %v601, %v601
    %v604 = vpack.c.bf16 %v602, %v602
    %605 = vmatprep.subr.bf16.mxu0 %v428
    %606 = vmatpush1.bf16.msra.mxu0 %v427
    %607 = vmatprep.subr.bf16.mxu0 %v430
    %608 = vmatpush1.bf16.msra.mxu0 %v429
    %609 = vmatprep.subr.bf16.mxu0 %v432
    %610 = vmatpush1.bf16.msra.mxu0 %v431
    %611 = vmatprep.subr.bf16.mxu0 %v434
    %612 = vmatpush1.bf16.msra.mxu0 %v433
    %613 = vmatprep.subr.bf16.mxu0 %v436
    %614 = vmatpush1.bf16.msra.mxu0 %v435
    %615 = vmatprep.subr.bf16.mxu0 %v438
    %616 = vmatpush1.bf16.msra.mxu0 %v437
    %617 = vmatprep.subr.bf16.mxu0 %v440
    %618 = vmatpush1.bf16.msra.mxu0 %v439
    %619 = vmatprep.subr.bf16.mxu0 %v442
    %620 = vmatpush1.bf16.msra.mxu0 %v441
    %621 = vmatprep.subr.bf16.mxu0 %v444
    %622 = vmatpush1.bf16.msra.mxu0 %v443
    %623 = vmatprep.subr.bf16.mxu0 %v446
    %624 = vmatpush1.bf16.msra.mxu0 %v445
    %625 = vmatprep.subr.bf16.mxu0 %v448
    %626 = vmatpush1.bf16.msra.mxu0 %v447
    %627 = vmatprep.subr.bf16.mxu0 %v450
    %628 = vmatpush1.bf16.msra.mxu0 %v449
    %629 = vmatprep.subr.bf16.mxu0 %v452
    %630 = vmatpush1.bf16.msra.mxu0 %v451
    %631 = vmatprep.subr.bf16.mxu0 %v454
    %632 = vmatpush1.bf16.msra.mxu0 %v453
    %633 = vmatprep.subr.bf16.mxu0 %v456
    %634 = vmatpush1.bf16.msra.mxu0 %v455
    %635 = vmatprep.subr.bf16.mxu0 %v458
    %636 = vmatpush1.bf16.msra.mxu0 %v457
    %637 = vmatprep.mubr.bf16.mxu0 %v604
    %638 = vmatmul.mubr.bf16.gmra.mrb[0].mxu0 %v603
    %v639 = vpop.f32.mrb[0].mxu0
    %v640 = vadd.f32 0.0, %v639
    %v641 = vpop.f32.mrb[0].mxu0
    %v642 = vadd.f32 0.0, %v641
    %v643 = vpop.f32.mrb[0].mxu0
    %v644 = vpop.f32.mrb[0].mxu0
    %645 = vdwg.mxu0
    %v646 = vadd.f32 %v315, %v640
    %v647 = vadd.f32 %v317, %v642
    %v648 = vadd.f32 %v646, %v599
    %v649 = vadd.f32 %v647, %v600
    %v650 = vmax.f32 %v648, -0.0001
    %v651 = vmax.f32 %v649, -0.0001
    %v652 = vmin.f32 %v650, 0.0001
    %v653 = vmin.f32 %v651, 0.0001
    %v654 = vsub.f32 %v648, %v652
    %v655 = vsub.f32 %v649, %v653
    %v656 = vadd.f32 %v599, %v652
    %v657 = vadd.f32 %v600, %v653
    %v658 = vsub.f32 %v654, %v656
    %v659 = vsub.f32 %v655, %v657
    %v660 = vpack.c.bf16 %v658, %v658
    %v661 = vpack.c.bf16 %v659, %v659
    %v694 = vunpack.c.l.b16 %v135
    %v695 = vunpack.c.l.b16 %v136
    %v696 = vunpack.c.l.b16 %v137
    %v697 = vunpack.c.l.b16 %v138
    %v698 = vunpack.c.l.b16 %v139
    %v699 = vunpack.c.l.b16 %v140
    %v700 = vunpack.c.l.b16 %v141
    %v701 = vunpack.c.l.b16 %v142
    %v702 = vunpack.c.l.b16 %v143
    %v703 = vunpack.c.l.b16 %v144
    %v704 = vunpack.c.l.b16 %v145
    %v705 = vunpack.c.l.b16 %v146
    %v706 = vunpack.c.l.b16 %v147
    %v707 = vunpack.c.l.b16 %v148
    %v708 = vunpack.c.l.b16 %v149
    %v709 = vunpack.c.l.b16 %v150
    %v710 = vunpack.c.l.b16 %v151
    %v711 = vunpack.c.l.b16 %v152
    %v712 = vunpack.c.l.b16 %v153
    %v713 = vunpack.c.l.b16 %v154
    %v714 = vunpack.c.l.b16 %v155
    %v715 = vunpack.c.l.b16 %v156
    %v716 = vunpack.c.l.b16 %v157
    %v717 = vunpack.c.l.b16 %v158
    %v718 = vunpack.c.l.b16 %v159
    %v719 = vunpack.c.l.b16 %v160
    %v720 = vunpack.c.l.b16 %v161
    %v721 = vunpack.c.l.b16 %v162
    %v722 = vunpack.c.l.b16 %v163
    %v723 = vunpack.c.l.b16 %v164
    %v724 = vunpack.c.l.b16 %v165
    %v725 = vunpack.c.l.b16 %v166
    %v726 = vpack.c.b16 %v695, %v694
    %v727 = vpack.c.b16 %v697, %v696
    %v728 = vpack.c.b16 %v699, %v698
    %v729 = vpack.c.b16 %v701, %v700
    %v730 = vpack.c.b16 %v703, %v702
    %v731 = vpack.c.b16 %v705, %v704
    %v732 = vpack.c.b16 %v707, %v706
    %v733 = vpack.c.b16 %v709, %v708
    %v734 = vpack.c.b16 %v711, %v710
    %v735 = vpack.c.b16 %v713, %v712
    %v736 = vpack.c.b16 %v715, %v714
    %v737 = vpack.c.b16 %v717, %v716
    %v738 = vpack.c.b16 %v719, %v718
    %v739 = vpack.c.b16 %v721, %v720
    %v740 = vpack.c.b16 %v723, %v722
    %v741 = vpack.c.b16 %v725, %v724
    %758 = vmatprep.subr.bf16.mxu0 0
    %759 = vmatpush1.bf16.msra.mxu0 %v726
    %760 = vmatprep.subr.bf16.mxu0 0
    %761 = vmatpush1.bf16.msra.mxu0 %v727
    %762 = vmatprep.subr.bf16.mxu0 0
    %763 = vmatpush1.bf16.msra.mxu0 %v728
    %764 = vmatprep.subr.bf16.mxu0 0
    %765 = vmatpush1.bf16.msra.mxu0 %v729
    %766 = vmatprep.subr.bf16.mxu0 0
    %767 = vmatpush1.bf16.msra.mxu0 %v730
    %768 = vmatprep.subr.bf16.mxu0 0
    %769 = vmatpush1.bf16.msra.mxu0 %v731
    %770 = vmatprep.subr.bf16.mxu0 0
    %771 = vmatpush1.bf16.msra.mxu0 %v732
    %772 = vmatprep.subr.bf16.mxu0 0
    %773 = vmatpush1.bf16.msra.mxu0 %v733
    %774 = vmatprep.subr.bf16.mxu0 0
    %775 = vmatpush1.bf16.msra.mxu0 %v734
    %776 = vmatprep.subr.bf16.mxu0 0
    %777 = vmatpush1.bf16.msra.mxu0 %v735
    %778 = vmatprep.subr.bf16.mxu0 0
    %779 = vmatpush1.bf16.msra.mxu0 %v736
    %780 = vmatprep.subr.bf16.mxu0 0
    %781 = vmatpush1.bf16.msra.mxu0 %v737
    %782 = vmatprep.subr.bf16.mxu0 0
    %783 = vmatpush1.bf16.msra.mxu0 %v738
    %784 = vmatprep.subr.bf16.mxu0 0
    %785 = vmatpush1.bf16.msra.mxu0 %v739
    %786 = vmatprep.subr.bf16.mxu0 0
    %787 = vmatpush1.bf16.msra.mxu0 %v740
    %788 = vmatprep.subr.bf16.mxu0 0
    %789 = vmatpush1.bf16.msra.mxu0 %v741
    %790 = vmatprep.mubr.bf16.mxu0 %v661
    %791 = vmatmul.mubr.bf16.gmra.mrb[0].mxu0 %v660
    %v792 = vpop.f32.mrb[0].mxu0
    %v793 = vadd.f32 0.0, %v792
    %v794 = vpop.f32.mrb[0].mxu0
    %v795 = vpop.f32.mrb[0].mxu0
    %v796 = vpop.f32.mrb[0].mxu0
    %797 = vdwg.mxu0
    %v814 = vunpack.c.l.b16 %v103
    %v815 = vunpack.c.l.b16 %v104
    %v816 = vunpack.c.l.b16 %v105
    %v817 = vunpack.c.l.b16 %v106
    %v818 = vunpack.c.l.b16 %v107
    %v819 = vunpack.c.l.b16 %v108
    %v820 = vunpack.c.l.b16 %v109
    %v821 = vunpack.c.l.b16 %v110
    %v822 = vunpack.c.l.b16 %v111
    %v823 = vunpack.c.l.b16 %v112
    %v824 = vunpack.c.l.b16 %v113
    %v825 = vunpack.c.l.b16 %v114
    %v826 = vunpack.c.l.b16 %v115
    %v827 = vunpack.c.l.b16 %v116
    %v828 = vunpack.c.l.b16 %v117
    %v829 = vunpack.c.l.b16 %v118
    %v830 = vpack.c.b16 %v815, %v814
    %v831 = vpack.c.b16 %v817, %v816
    %v832 = vpack.c.b16 %v819, %v818
    %v833 = vpack.c.b16 %v821, %v820
    %v834 = vpack.c.b16 %v823, %v822
    %v835 = vpack.c.b16 %v825, %v824
    %v836 = vpack.c.b16 %v827, %v826
    %v837 = vpack.c.b16 %v829, %v828
    %846 = vmatprep.subr.bf16.mxu0 0
    %847 = vmatpush1.bf16.msra.mxu0 %v830
    %848 = vmatprep.subr.bf16.mxu0 0
    %849 = vmatpush1.bf16.msra.mxu0 %v831
    %850 = vmatprep.subr.bf16.mxu0 0
    %851 = vmatpush1.bf16.msra.mxu0 %v832
    %852 = vmatprep.subr.bf16.mxu0 0
    %853 = vmatpush1.bf16.msra.mxu0 %v833
    %854 = vmatprep.subr.bf16.mxu0 0
    %855 = vmatpush1.bf16.msra.mxu0 %v834
    %856 = vmatprep.subr.bf16.mxu0 0
    %857 = vmatpush1.bf16.msra.mxu0 %v835
    %858 = vmatprep.subr.bf16.mxu0 0
    %859 = vmatpush1.bf16.msra.mxu0 %v836
    %860 = vmatprep.subr.bf16.mxu0 0
    %861 = vmatpush1.bf16.msra.mxu0 %v837
    %862 = vmatprep.subr.bf16.mxu0 0
    %863 = vmatpush1.bf16.msra.mxu0 0
    %864 = vmatprep.subr.bf16.mxu0 0
    %865 = vmatpush1.bf16.msra.mxu0 0
    %866 = vmatprep.subr.bf16.mxu0 0
    %867 = vmatpush1.bf16.msra.mxu0 0
    %868 = vmatprep.subr.bf16.mxu0 0
    %869 = vmatpush1.bf16.msra.mxu0 0
    %870 = vmatprep.subr.bf16.mxu0 0
    %871 = vmatpush1.bf16.msra.mxu0 0
    %872 = vmatprep.subr.bf16.mxu0 0
    %873 = vmatpush1.bf16.msra.mxu0 0
    %874 = vmatprep.subr.bf16.mxu0 0
    %875 = vmatpush1.bf16.msra.mxu0 0
    %876 = vmatprep.subr.bf16.mxu0 0
    %877 = vmatpush1.bf16.msra.mxu0 0
    %878 = vmatprep.mubr.bf16.mxu0 0
    %879 = vmatmul.mubr.bf16.gmra.mrb[0].mxu0 %v199
    %v880 = vpop.f32.mrb[0].mxu0
    %v881 = vadd.f32 %v793, %v880
    %v882 = vpop.f32.mrb[0].mxu0
    %v883 = vpop.f32.mrb[0].mxu0
    %v884 = vpop.f32.mrb[0].mxu0
    %885 = vdwg.mxu0
    %s886 = sld [smem:[#allocation2]]
    %s887 = sld [smem:[#allocation2 + $0x1]]
    %v888 = vstv %s886
    %v889 = vmax.f32 %v888, %v881
    %v890 = vstv %s887
    %v891 = vmin.f32 %v890, %v889
    %892 = vst [vmem:[#allocation13] sm:$0xff] %v891
    // Predicated region
    $region50: #{tpu_custom_call.1} parent=1 // pred_check
      _
    $region51: #{tpu_custom_call.1} parent=1 // pred_check_branch
      %894 = sbr.rel (0) target = $region53
    $region52: #{tpu_custom_call.1} parent=1 // pred_region
      %s896 = ssub.s32 128, 128
      %897 = vsyncadd [#allocation4], %s896
      %s899 = sshll.u32 [#allocation13], 4
      %s900 = int_to_ptr.vmem [resolvable:$true] %s899
      %902 = dma.vmem_to_hbm [thread:$0]  %s900, 128, %s6, [#allocation4]
    $region53: #{tpu_custom_call.1} parent=1 // pred_fallthru
      _
    // Predicated region
    $region54: #{tpu_custom_call.1} parent=1 // pred_check
      _
    $region55: #{tpu_custom_call.1} parent=1 // pred_check_branch
      %904 = sbr.rel (0) target = $region57
    $region56: #{tpu_custom_call.1} parent=1 // pred_region
      %905 = dma.done [#allocation4], 128
    $region57: #{tpu_custom_call.1} parent=1 // pred_fallthru
      _
    %906 = vsyncpa [#allocation3], 1
    %907 = vsyncpa [#allocation8], 1
    %908 = vsyncpa [#allocation11], 1
    %909 = vsyncpa [#allocation4], 1
    %910 = vsyncpa [#allocation5], 1

</llo_original>
